<compile_context>
chip_gen: v7x
topology: tpu7x:2x2x1
jax: 0.10.0
libtpu: 0.0.40
codegen_flags: <defaults>
</compile_context>

<pallas_src>
import functools
import math

import jax
import jax.numpy as jnp
from jax.experimental import pallas as pl
from jax.experimental.pallas import tpu as pltpu

_LN_EPS = 1e-5     # torch nn.LayerNorm default
_LANE = 128
_SUBLANE = 8


def _round_up(n, m):
    return ((n + m - 1) // m) * m


def _gelu(x, approximate):
    if approximate:
        # tanh formulation -> EUP (its own VLIW slot); opt-in, changes numerics slightly.
        return jax.nn.gelu(x, approximate=True)
    # torch nn.GELU() default is the exact erf formulation.
    return 0.5 * x * (1.0 + jax.lax.erf(x * (1.0 / math.sqrt(2.0))))


def _layernorm_padded(x, gamma, beta, n_real):
    """LayerNorm over the first `n_real` lanes of a lane-padded (rows, n_pad) block.

    Padded lanes of `x` are exactly zero (zero-padded weight columns / biases), so
    sum(x) and sum(x*x) over all lanes equal the sums over the real lanes — no lane
    mask needed.  gamma/beta are zero in padded lanes, so padded outputs stay 0.
    """
    inv_n = 1.0 / float(n_real)
    mean = jnp.sum(x, axis=-1, keepdims=True) * inv_n
    ex2 = jnp.sum(x * x, axis=-1, keepdims=True) * inv_n
    var = jnp.maximum(ex2 - mean * mean, 0.0)   # guard tiny negative from cancellation
    return (x - mean) * jax.lax.rsqrt(var + _LN_EPS) * gamma + beta


def _freq_kernel(x_ref, w1_ref, b1_ref, g1_ref, be1_ref,
                 wf_ref, bf_ref, g2_ref, be2_ref,
                 out_ref, *, hidden_dim, approximate_gelu):
    w1 = w1_ref[...]
    x = x_ref[...].astype(w1.dtype)          # matmul operands in the stored weight dtype

    # ---- freq_embedding: Linear -> LayerNorm -> GELU -> Dropout(eval = identity) ----
    h = jnp.dot(x, w1, preferred_element_type=jnp.float32) + b1_ref[...]
    h = _gelu(_layernorm_padded(h, g1_ref[...], be1_ref[...], hidden_dim), approximate_gelu)

    # ---- attention (seq_len==1 => attn == V) + out_proj + output Linear, folded ----
    wf = wf_ref[...]
    o = jnp.dot(h.astype(wf.dtype), wf, preferred_element_type=jnp.float32) + bf_ref[...]

    # ---- output_layer tail: LayerNorm -> GELU -> Dropout(eval = identity) ----
    o = _gelu(_layernorm_padded(o, g2_ref[...], be2_ref[...], hidden_dim), approximate_gelu)
    out_ref[...] = o.astype(out_ref.dtype)


def prepare_params(raw, matmul_dtype=jnp.bfloat16):
    """Fold V/out_proj/output-Linear weights, zero-pad the hidden (lane) dim to 128,
    and store the two matmul weights in `matmul_dtype` (bf16 = native MXU rate).

    `raw` holds Linear weights pre-transposed to (in_features, out_features).
    The contraction dim of w1 (freq_dim) is intentionally NOT padded.
    """
    freq_dim, hidden_dim = raw["w1"].shape
    hp = _round_up(hidden_dim, _LANE)

    # Fold:  ((h @ wv + bv) @ wo + bo) @ w2 + b2  ==  h @ Wf + bf   (done in f32)
    wf = raw["wv"] @ raw["wo"] @ raw["w2"]
    bf = (raw["bv"] @ raw["wo"] + raw["bo"]) @ raw["w2"] + raw["b2"]

    def pad_cols(a, cols):
        return jnp.pad(a, ((0, 0), (0, cols - a.shape[-1])))

    def pad_rc(a, rows, cols):
        return jnp.pad(a, ((0, rows - a.shape[0]), (0, cols - a.shape[1])))

    return dict(
        w1=pad_cols(raw["w1"], hp).astype(matmul_dtype),   # (freq_dim, Hp), K unpadded
        b1=pad_cols(raw["b1"], hp),
        g1=pad_cols(raw["g1"], hp), be1=pad_cols(raw["be1"], hp),
        wf=pad_rc(wf, hp, hp).astype(matmul_dtype),         # (Hp, Hp)
        bf=pad_cols(bf, hp),
        g2=pad_cols(raw["g2"], hp), be2=pad_cols(raw["be2"], hp),
    )


@functools.partial(
    jax.jit,
    static_argnames=("hidden_dim", "block_b", "trim_output",
                     "approximate_gelu", "resident_buffered"))
def _impl(x_fft, params, *, hidden_dim, block_b, trim_output,
          approximate_gelu, resident_buffered):
    B, F = x_fft.shape
    Fw, Hp = params["w1"].shape
    assert Fw == F, (Fw, F)

    # ---- batch tile -------------------------------------------------------------
    if B <= block_b:
        tb = B
        if B >= 2 * _SUBLANE:
            # Keep >= 2 grid steps so the "parallel" batch axis can shard across both
            # v7x TensorCores; negligible (~0.35 us/step) cost on single-TC v5e/v6e.
            tb = _round_up(pl.cdiv(B, 2), _SUBLANE)
    else:
        tb = max(_SUBLANE, (block_b // _SUBLANE) * _SUBLANE)
    grid = (pl.cdiv(B, tb),)

    # ---- VMEM budget: weights single-buffered, activation tiles double-buffered --
    w_itemsize = jnp.dtype(params["w1"].dtype).itemsize
    weight_bytes = (F * Hp + Hp * Hp) * w_itemsize + 8 * Hp * 4
    act_bytes = 2 * tb * F * 4 + 2 * tb * Hp * 4
    temps_bytes = 6 * tb * Hp * 4            # headroom for in-kernel f32 temporaries
    need = int(1.25 * (weight_bytes + act_bytes + temps_bytes))
    try:
        phys_vmem = pltpu.get_tpu_info().vmem_capacity_bytes
    except Exception:
        phys_vmem = 64 * 1024 * 1024         # conservative (v7x per-TC)
    vmem_limit = max(32 * 1024 * 1024, min(need, phys_vmem * 3 // 4))

    # ---- specs ------------------------------------------------------------------
    if resident_buffered:
        def resident(shape):
            return pl.BlockSpec(shape, lambda i: (0, 0), pipeline_mode=pl.Buffered(1))
    else:
        def resident(shape):
            return pl.BlockSpec(shape, lambda i: (0, 0))

    in_specs = [
        pl.BlockSpec((tb, F), lambda i: (i, 0)),    # x tile; last dim = full (unpadded) F
        resident((F, Hp)), resident((1, Hp)), resident((1, Hp)), resident((1, Hp)),
        resident((Hp, Hp)), resident((1, Hp)), resident((1, Hp)), resident((1, Hp)),
    ]
    out_specs = pl.BlockSpec((tb, Hp), lambda i: (i, 0))   # lane-dense stores

    out_padded = pl.pallas_call(
        functools.partial(_freq_kernel, hidden_dim=hidden_dim,
                          approximate_gelu=approximate_gelu),
        out_shape=jax.ShapeDtypeStruct((B, Hp), jnp.float32),
        grid=grid,
        in_specs=in_specs,
        out_specs=out_specs,
        compiler_params=pltpu.CompilerParams(
            dimension_semantics=("parallel",),      # megacore-shardable batch axis
            vmem_limit_bytes=vmem_limit,
        ),
    )(x_fft, params["w1"], params["b1"], params["g1"], params["be1"],
      params["wf"], params["bf"], params["g2"], params["be2"])

    if trim_output and Hp != hidden_dim:
        # Extra HBM pass — prefer trim_output=False when the consumer tolerates padding.
        return out_padded[:, :hidden_dim]
    return out_padded


def improved_frequency_feature_extractor(x_fft, params, *, hidden_dim, block_b=1024,
                                          trim_output=True, approximate_gelu=False):
    """Forward pass of ImprovedFrequencyFeatureExtractor (eval mode)."""
    try:
        return _impl(x_fft, params, hidden_dim=hidden_dim, block_b=block_b,
                     trim_output=trim_output, approximate_gelu=approximate_gelu,
                     resident_buffered=True)
    except Exception:
        # Fallback if this jax build rejects pipeline_mode=pl.Buffered(1) on BlockSpecs.
        return _impl(x_fft, params, hidden_dim=hidden_dim, block_b=block_b,
                     trim_output=trim_output, approximate_gelu=approximate_gelu,
                     resident_buffered=False)


# --------------------------------------------------------------------------------
# Synthetic parameter init + plain-JAX reference (mirrors the PyTorch forward).
# --------------------------------------------------------------------------------
def init_params(key, freq_dim, hidden_dim, num_heads=4):
    """Deterministic synthetic init mirroring the module's parameter shapes.
    Linear weights stored transposed: (in_features, out_features)."""
    ks = jax.random.split(key, 10)

    def lin(k, fan_in, fan_out):
        bound = 1.0 / math.sqrt(fan_in)
        kw, kb = jax.random.split(k)
        w = jax.random.uniform(kw, (fan_in, fan_out), jnp.float32, -bound, bound)
        b = jax.random.uniform(kb, (1, fan_out), jnp.float32, -bound, bound)
        return w, b

    w1, b1 = lin(ks[0], freq_dim, hidden_dim)
    wq, bq = lin(ks[1], hidden_dim, hidden_dim)
    wk, bk = lin(ks[2], hidden_dim, hidden_dim)
    wv, bv = lin(ks[3], hidden_dim, hidden_dim)
    wo, bo = lin(ks[4], hidden_dim, hidden_dim)
    w2, b2 = lin(ks[5], hidden_dim, hidden_dim)
    g1 = 1.0 + 0.1 * jax.random.normal(ks[6], (1, hidden_dim), jnp.float32)
    be1 = 0.1 * jax.random.normal(ks[7], (1, hidden_dim), jnp.float32)
    g2 = 1.0 + 0.1 * jax.random.normal(ks[8], (1, hidden_dim), jnp.float32)
    be2 = 0.1 * jax.random.normal(ks[9], (1, hidden_dim), jnp.float32)
    return dict(w1=w1, b1=b1, g1=g1, be1=be1,
                wq=wq, bq=bq, wk=wk, bk=bk, wv=wv, bv=bv,
                wo=wo, bo=bo, w2=w2, b2=b2, g2=g2, be2=be2)


def _reference(x, p, num_heads):
    """Plain-JAX mirror of the PyTorch forward (eval mode), incl. the length-1 attention."""
    def ln(a, g, b):
        m = a.mean(-1, keepdims=True)
        v = ((a - m) ** 2).mean(-1, keepdims=True)
        return (a - m) / jnp.sqrt(v + _LN_EPS) * g + b

    h = x @ p["w1"] + p["b1"]
    h = jax.nn.gelu(ln(h, p["g1"], p["be1"]), approximate=False)
    B, H = h.shape
    hd = H // num_heads
    q = (h @ p["wq"] + p["bq"]).reshape(B, num_heads, hd)
    k = (h @ p["wk"] + p["bk"]).reshape(B, num_heads, hd)
    v = (h @ p["wv"] + p["bv"]).reshape(B, num_heads, hd)
    scores = (q * k).sum(-1, keepdims=True) / math.sqrt(hd)   # single key
    w = jax.nn.softmax(scores, axis=-1)                       # == 1
    attn = (w * v).reshape(B, H)
    attn = attn @ p["wo"] + p["bo"]
    o = attn @ p["w2"] + p["b2"]
    return jax.nn.gelu(ln(o, p["g2"], p["be2"]), approximate=False)


# TODO(synk): Dropout is implemented as identity (eval/inference mode); train-mode
# stochastic masking is out of scope for this forward-pass kernel.

if __name__ == "__main__":
    B, FREQ_DIM, HIDDEN_DIM, NUM_HEADS = 64, 16, 32, 4
    key = jax.random.PRNGKey(0)
    kx, kp = jax.random.split(key)
    x_fft = jax.random.normal(kx, (B, FREQ_DIM), jnp.float32)
    raw_params = init_params(kp, FREQ_DIM, HIDDEN_DIM, NUM_HEADS)
    ref = _reference(x_fft, raw_params, NUM_HEADS)

    # --- exact path (f32 matmul weights): tight check vs. the torch-equivalent forward ---
    params_f32 = prepare_params(raw_params, matmul_dtype=jnp.float32)
    out_f32 = jax.block_until_ready(
        improved_frequency_feature_extractor(x_fft, params_f32, hidden_dim=HIDDEN_DIM))
    assert out_f32.shape == (B, HIDDEN_DIM), out_f32.shape
    assert jnp.allclose(out_f32, ref, atol=1e-4, rtol=1e-4), \
        f"f32 max_err={float(jnp.max(jnp.abs(out_f32 - ref)))}"

    # --- fast path (bf16 matmul operands, f32 accumulate / LN / GELU): looser check ---
    params_bf16 = prepare_params(raw_params, matmul_dtype=jnp.bfloat16)
    out_bf16 = jax.block_until_ready(
        improved_frequency_feature_extractor(x_fft, params_bf16, hidden_dim=HIDDEN_DIM))
    assert out_bf16.shape == (B, HIDDEN_DIM), out_bf16.shape
    assert bool(jnp.all(jnp.isfinite(out_bf16)))
    assert jnp.allclose(out_bf16, ref, atol=1e-1, rtol=1e-1), \
        f"bf16 max_err={float(jnp.max(jnp.abs(out_bf16 - ref)))}"

    print("KERNEL_OK")
</pallas_src>

<mosaic_0001>
module attributes {stable_mosaic.version = 11 : i64} {
  func.func @_freq_kernel(%arg0: i32, %arg1: memref<32x16xf32, #tpu.memory_space<vmem>>, %arg2: memref<16x128xf32, #tpu.memory_space<vmem>>, %arg3: memref<1x128xf32, #tpu.memory_space<vmem>>, %arg4: memref<1x128xf32, #tpu.memory_space<vmem>>, %arg5: memref<1x128xf32, #tpu.memory_space<vmem>>, %arg6: memref<128x128xf32, #tpu.memory_space<vmem>>, %arg7: memref<1x128xf32, #tpu.memory_space<vmem>>, %arg8: memref<1x128xf32, #tpu.memory_space<vmem>>, %arg9: memref<1x128xf32, #tpu.memory_space<vmem>>, %arg10: memref<32x128xf32, #tpu.memory_space<vmem>>) attributes {dimension_semantics = [#tpu.dimension_semantics<parallel>], iteration_bounds = array<i64: 2>, scalar_prefetch = 0 : i64, scratch_operands = 0 : i64, tpu.core_type = #tpu.core_type<tc>, window_params = [{transform_indices = @transform_0, window_bounds = array<i64: 32, 16>}, {pipeline_mode = #tpu.pipeline_mode<synchronous>, transform_indices = @transform_1, window_bounds = array<i64: 16, 128>}, {pipeline_mode = #tpu.pipeline_mode<synchronous>, transform_indices = @transform_2, window_bounds = array<i64: 1, 128>}, {pipeline_mode = #tpu.pipeline_mode<synchronous>, transform_indices = @transform_3, window_bounds = array<i64: 1, 128>}, {pipeline_mode = #tpu.pipeline_mode<synchronous>, transform_indices = @transform_4, window_bounds = array<i64: 1, 128>}, {pipeline_mode = #tpu.pipeline_mode<synchronous>, transform_indices = @transform_5, window_bounds = array<i64: 128, 128>}, {pipeline_mode = #tpu.pipeline_mode<synchronous>, transform_indices = @transform_6, window_bounds = array<i64: 1, 128>}, {pipeline_mode = #tpu.pipeline_mode<synchronous>, transform_indices = @transform_7, window_bounds = array<i64: 1, 128>}, {pipeline_mode = #tpu.pipeline_mode<synchronous>, transform_indices = @transform_8, window_bounds = array<i64: 1, 128>}, {transform_indices = @transform_9, window_bounds = array<i64: 32, 128>}]} {
    %c0 = arith.constant 0 : index
    %c0_0 = arith.constant 0 : index
    %0 = vector.load %arg2[%c0, %c0_0] : memref<16x128xf32, #tpu.memory_space<vmem>>, vector<16x128xf32>
    %c0_1 = arith.constant 0 : index
    %c0_2 = arith.constant 0 : index
    %1 = vector.load %arg1[%c0_1, %c0_2] : memref<32x16xf32, #tpu.memory_space<vmem>>, vector<32x16xf32>
    %cst = arith.constant dense<0.000000e+00> : vector<32x128xf32>
    %2 = tpu.matmul %1, %0, %cst {dimension_numbers = #tpu.dot_dimension_numbers<[1], [0], [0], [1], [0, 0, 1, 1], [], []>} : vector<32x16xf32>, vector<16x128xf32>, vector<32x128xf32> -> vector<32x128xf32>
    %c0_3 = arith.constant 0 : index
    %c0_4 = arith.constant 0 : index
    %3 = vector.load %arg3[%c0_3, %c0_4] : memref<1x128xf32, #tpu.memory_space<vmem>>, vector<1x128xf32>
    %4 = vector.broadcast %3 : vector<1x128xf32> to vector<32x128xf32>
    %5 = arith.addf %2, %4 : vector<32x128xf32>
    %c0_5 = arith.constant 0 : index
    %c0_6 = arith.constant 0 : index
    %6 = vector.load %arg4[%c0_5, %c0_6] : memref<1x128xf32, #tpu.memory_space<vmem>>, vector<1x128xf32>
    %c0_7 = arith.constant 0 : index
    %c0_8 = arith.constant 0 : index
    %7 = vector.load %arg5[%c0_7, %c0_8] : memref<1x128xf32, #tpu.memory_space<vmem>>, vector<1x128xf32>
    %cst_9 = arith.constant dense<0.000000e+00> : vector<32xf32>
    %8 = vector.multi_reduction <add>, %5, %cst_9 [1] : vector<32x128xf32> to vector<32xf32>
    %9 = vector.shape_cast %8 : vector<32xf32> to vector<32x1xf32>
    %cst_10 = arith.constant 3.125000e-02 : f32
    %10 = vector.broadcast %cst_10 : f32 to vector<32x1xf32>
    %11 = arith.mulf %9, %10 : vector<32x1xf32>
    %12 = arith.mulf %5, %5 : vector<32x128xf32>
    %cst_11 = arith.constant dense<0.000000e+00> : vector<32xf32>
    %13 = vector.multi_reduction <add>, %12, %cst_11 [1] : vector<32x128xf32> to vector<32xf32>
    %14 = vector.shape_cast %13 : vector<32xf32> to vector<32x1xf32>
    %cst_12 = arith.constant 3.125000e-02 : f32
    %15 = vector.broadcast %cst_12 : f32 to vector<32x1xf32>
    %16 = arith.mulf %14, %15 : vector<32x1xf32>
    %17 = arith.mulf %11, %11 : vector<32x1xf32>
    %18 = arith.subf %16, %17 : vector<32x1xf32>
    %cst_13 = arith.constant 0.000000e+00 : f32
    %19 = vector.broadcast %cst_13 : f32 to vector<32x1xf32>
    %20 = arith.maximumf %18, %19 : vector<32x1xf32>
    %21 = vector.broadcast %11 : vector<32x1xf32> to vector<32x128xf32>
    %22 = arith.subf %5, %21 : vector<32x128xf32>
    %cst_14 = arith.constant 9.99999974E-6 : f32
    %23 = vector.broadcast %cst_14 : f32 to vector<32x1xf32>
    %24 = arith.addf %20, %23 : vector<32x1xf32>
    %25 = math.rsqrt %24 : vector<32x1xf32>
    %26 = vector.broadcast %25 : vector<32x1xf32> to vector<32x128xf32>
    %27 = arith.mulf %22, %26 : vector<32x128xf32>
    %28 = vector.broadcast %6 : vector<1x128xf32> to vector<32x128xf32>
    %29 = arith.mulf %27, %28 : vector<32x128xf32>
    %30 = vector.broadcast %7 : vector<1x128xf32> to vector<32x128xf32>
    %31 = arith.addf %29, %30 : vector<32x128xf32>
    %cst_15 = arith.constant 5.000000e-01 : f32
    %32 = vector.broadcast %cst_15 : f32 to vector<32x128xf32>
    %33 = arith.mulf %32, %31 : vector<32x128xf32>
    %cst_16 = arith.constant 0.707106769 : f32
    %34 = vector.broadcast %cst_16 : f32 to vector<32x128xf32>
    %35 = arith.mulf %31, %34 : vector<32x128xf32>
    %36 = math.erf %35 : vector<32x128xf32>
    %cst_17 = arith.constant 1.000000e+00 : f32
    %37 = vector.broadcast %cst_17 : f32 to vector<32x128xf32>
    %38 = arith.addf %37, %36 : vector<32x128xf32>
    %39 = arith.mulf %33, %38 : vector<32x128xf32>
    %c0_18 = arith.constant 0 : index
    %c0_19 = arith.constant 0 : index
    %40 = vector.load %arg6[%c0_18, %c0_19] : memref<128x128xf32, #tpu.memory_space<vmem>>, vector<128x128xf32>
    %cst_20 = arith.constant dense<0.000000e+00> : vector<32x128xf32>
    %41 = tpu.matmul %39, %40, %cst_20 {dimension_numbers = #tpu.dot_dimension_numbers<[1], [0], [0], [1], [0, 0, 1, 1], [], []>} : vector<32x128xf32>, vector<128x128xf32>, vector<32x128xf32> -> vector<32x128xf32>
    %c0_21 = arith.constant 0 : index
    %c0_22 = arith.constant 0 : index
    %42 = vector.load %arg7[%c0_21, %c0_22] : memref<1x128xf32, #tpu.memory_space<vmem>>, vector<1x128xf32>
    %43 = vector.broadcast %42 : vector<1x128xf32> to vector<32x128xf32>
    %44 = arith.addf %41, %43 : vector<32x128xf32>
    %c0_23 = arith.constant 0 : index
    %c0_24 = arith.constant 0 : index
    %45 = vector.load %arg8[%c0_23, %c0_24] : memref<1x128xf32, #tpu.memory_space<vmem>>, vector<1x128xf32>
    %c0_25 = arith.constant 0 : index
    %c0_26 = arith.constant 0 : index
    %46 = vector.load %arg9[%c0_25, %c0_26] : memref<1x128xf32, #tpu.memory_space<vmem>>, vector<1x128xf32>
    %cst_27 = arith.constant dense<0.000000e+00> : vector<32xf32>
    %47 = vector.multi_reduction <add>, %44, %cst_27 [1] : vector<32x128xf32> to vector<32xf32>
    %48 = vector.shape_cast %47 : vector<32xf32> to vector<32x1xf32>
    %cst_28 = arith.constant 3.125000e-02 : f32
    %49 = vector.broadcast %cst_28 : f32 to vector<32x1xf32>
    %50 = arith.mulf %48, %49 : vector<32x1xf32>
    %51 = arith.mulf %44, %44 : vector<32x128xf32>
    %cst_29 = arith.constant dense<0.000000e+00> : vector<32xf32>
    %52 = vector.multi_reduction <add>, %51, %cst_29 [1] : vector<32x128xf32> to vector<32xf32>
    %53 = vector.shape_cast %52 : vector<32xf32> to vector<32x1xf32>
    %cst_30 = arith.constant 3.125000e-02 : f32
    %54 = vector.broadcast %cst_30 : f32 to vector<32x1xf32>
    %55 = arith.mulf %53, %54 : vector<32x1xf32>
    %56 = arith.mulf %50, %50 : vector<32x1xf32>
    %57 = arith.subf %55, %56 : vector<32x1xf32>
    %cst_31 = arith.constant 0.000000e+00 : f32
    %58 = vector.broadcast %cst_31 : f32 to vector<32x1xf32>
    %59 = arith.maximumf %57, %58 : vector<32x1xf32>
    %60 = vector.broadcast %50 : vector<32x1xf32> to vector<32x128xf32>
    %61 = arith.subf %44, %60 : vector<32x128xf32>
    %cst_32 = arith.constant 9.99999974E-6 : f32
    %62 = vector.broadcast %cst_32 : f32 to vector<32x1xf32>
    %63 = arith.addf %59, %62 : vector<32x1xf32>
    %64 = math.rsqrt %63 : vector<32x1xf32>
    %65 = vector.broadcast %64 : vector<32x1xf32> to vector<32x128xf32>
    %66 = arith.mulf %61, %65 : vector<32x128xf32>
    %67 = vector.broadcast %45 : vector<1x128xf32> to vector<32x128xf32>
    %68 = arith.mulf %66, %67 : vector<32x128xf32>
    %69 = vector.broadcast %46 : vector<1x128xf32> to vector<32x128xf32>
    %70 = arith.addf %68, %69 : vector<32x128xf32>
    %cst_33 = arith.constant 5.000000e-01 : f32
    %71 = vector.broadcast %cst_33 : f32 to vector<32x128xf32>
    %72 = arith.mulf %71, %70 : vector<32x128xf32>
    %cst_34 = arith.constant 0.707106769 : f32
    %73 = vector.broadcast %cst_34 : f32 to vector<32x128xf32>
    %74 = arith.mulf %70, %73 : vector<32x128xf32>
    %75 = math.erf %74 : vector<32x128xf32>
    %cst_35 = arith.constant 1.000000e+00 : f32
    %76 = vector.broadcast %cst_35 : f32 to vector<32x128xf32>
    %77 = arith.addf %76, %75 : vector<32x128xf32>
    %78 = arith.mulf %72, %77 : vector<32x128xf32>
    %c0_36 = arith.constant 0 : index
    %c0_37 = arith.constant 0 : index
    %79 = vector.load %arg10[%c0_36, %c0_37] : memref<32x128xf32, #tpu.memory_space<vmem>>, vector<32x128xf32>
    tpu.vector_store %arg10[%c0_36, %c0_37], %78 {strides = array<i32>} : memref<32x128xf32, #tpu.memory_space<vmem>>, vector<32x128xf32>,
    return
  }
  func.func @transform_0(%arg0: i32) -> (i32, i32) {
    %c0_i32 = arith.constant 0 : i32
    %c0_i32_0 = arith.constant 0 : i32
    return %arg0, %c0_i32 : i32, i32
  }
  func.func @transform_1(%arg0: i32) -> (i32, i32) {
    %c0_i32 = arith.constant 0 : i32
    %c0_i32_0 = arith.constant 0 : i32
    %c0_i32_1 = arith.constant 0 : i32
    return %c0_i32, %c0_i32_0 : i32, i32
  }
  func.func @transform_2(%arg0: i32) -> (i32, i32) {
    %c0_i32 = arith.constant 0 : i32
    %c0_i32_0 = arith.constant 0 : i32
    %c0_i32_1 = arith.constant 0 : i32
    return %c0_i32, %c0_i32_0 : i32, i32
  }
  func.func @transform_3(%arg0: i32) -> (i32, i32) {
    %c0_i32 = arith.constant 0 : i32
    %c0_i32_0 = arith.constant 0 : i32
    %c0_i32_1 = arith.constant 0 : i32
    return %c0_i32, %c0_i32_0 : i32, i32
  }
  func.func @transform_4(%arg0: i32) -> (i32, i32) {
    %c0_i32 = arith.constant 0 : i32
    %c0_i32_0 = arith.constant 0 : i32
    %c0_i32_1 = arith.constant 0 : i32
    return %c0_i32, %c0_i32_0 : i32, i32
  }
  func.func @transform_5(%arg0: i32) -> (i32, i32) {
    %c0_i32 = arith.constant 0 : i32
    %c0_i32_0 = arith.constant 0 : i32
    %c0_i32_1 = arith.constant 0 : i32
    return %c0_i32, %c0_i32_0 : i32, i32
  }
  func.func @transform_6(%arg0: i32) -> (i32, i32) {
    %c0_i32 = arith.constant 0 : i32
    %c0_i32_0 = arith.constant 0 : i32
    %c0_i32_1 = arith.constant 0 : i32
    return %c0_i32, %c0_i32_0 : i32, i32
  }
  func.func @transform_7(%arg0: i32) -> (i32, i32) {
    %c0_i32 = arith.constant 0 : i32
    %c0_i32_0 = arith.constant 0 : i32
    %c0_i32_1 = arith.constant 0 : i32
    return %c0_i32, %c0_i32_0 : i32, i32
  }
  func.func @transform_8(%arg0: i32) -> (i32, i32) {
    %c0_i32 = arith.constant 0 : i32
    %c0_i32_0 = arith.constant 0 : i32
    %c0_i32_1 = arith.constant 0 : i32
    return %c0_i32, %c0_i32_0 : i32, i32
  }
  func.func @transform_9(%arg0: i32) -> (i32, i32) {
    %c0_i32 = arith.constant 0 : i32
    %c0_i32_0 = arith.constant 0 : i32
    return %arg0, %c0_i32 : i32, i32
  }
}

module attributes {stable_mosaic.version = 11 : i64} {
  func.func @_freq_kernel(%arg0: i32, %arg1: memref<32x16xf32, #tpu.memory_space<vmem>>, %arg2: memref<16x128xf32, #tpu.memory_space<vmem>>, %arg3: memref<1x128xf32, #tpu.memory_space<vmem>>, %arg4: memref<1x128xf32, #tpu.memory_space<vmem>>, %arg5: memref<1x128xf32, #tpu.memory_space<vmem>>, %arg6: memref<128x128xf32, #tpu.memory_space<vmem>>, %arg7: memref<1x128xf32, #tpu.memory_space<vmem>>, %arg8: memref<1x128xf32, #tpu.memory_space<vmem>>, %arg9: memref<1x128xf32, #tpu.memory_space<vmem>>, %arg10: memref<32x128xf32, #tpu.memory_space<vmem>>) attributes {dimension_semantics = [#tpu.dimension_semantics<parallel>], iteration_bounds = array<i64: 2>, scalar_prefetch = 0 : i64, scratch_operands = 0 : i64, tpu.core_type = #tpu.core_type<tc>, window_params = [{transform_indices = @transform_0, window_bounds = array<i64: 32, 16>}, {pipeline_mode = #tpu.pipeline_mode<synchronous>, transform_indices = @transform_1, window_bounds = array<i64: 16, 128>}, {pipeline_mode = #tpu.pipeline_mode<synchronous>, transform_indices = @transform_2, window_bounds = array<i64: 1, 128>}, {pipeline_mode = #tpu.pipeline_mode<synchronous>, transform_indices = @transform_3, window_bounds = array<i64: 1, 128>}, {pipeline_mode = #tpu.pipeline_mode<synchronous>, transform_indices = @transform_4, window_bounds = array<i64: 1, 128>}, {pipeline_mode = #tpu.pipeline_mode<synchronous>, transform_indices = @transform_5, window_bounds = array<i64: 128, 128>}, {pipeline_mode = #tpu.pipeline_mode<synchronous>, transform_indices = @transform_6, window_bounds = array<i64: 1, 128>}, {pipeline_mode = #tpu.pipeline_mode<synchronous>, transform_indices = @transform_7, window_bounds = array<i64: 1, 128>}, {pipeline_mode = #tpu.pipeline_mode<synchronous>, transform_indices = @transform_8, window_bounds = array<i64: 1, 128>}, {transform_indices = @transform_9, window_bounds = array<i64: 32, 128>}]} {
    %c0 = arith.constant 0 : index
    %c0_0 = arith.constant 0 : index
    %0 = vector.load %arg2[%c0, %c0_0] : memref<16x128xf32, #tpu.memory_space<vmem>>, vector<16x128xf32>
    %c0_1 = arith.constant 0 : index
    %c0_2 = arith.constant 0 : index
    %1 = vector.load %arg1[%c0_1, %c0_2] : memref<32x16xf32, #tpu.memory_space<vmem>>, vector<32x16xf32>
    %cst = arith.constant dense<0.000000e+00> : vector<32x128xf32>
    %2 = tpu.matmul %1, %0, %cst {dimension_numbers = #tpu.dot_dimension_numbers<[1], [0], [0], [1], [0, 0, 1, 1], [], []>} : vector<32x16xf32>, vector<16x128xf32>, vector<32x128xf32> -> vector<32x128xf32>
    %c0_3 = arith.constant 0 : index
    %c0_4 = arith.constant 0 : index
    %3 = vector.load %arg3[%c0_3, %c0_4] : memref<1x128xf32, #tpu.memory_space<vmem>>, vector<1x128xf32>
    %4 = vector.broadcast %3 : vector<1x128xf32> to vector<32x128xf32>
    %5 = arith.addf %2, %4 : vector<32x128xf32>
    %c0_5 = arith.constant 0 : index
    %c0_6 = arith.constant 0 : index
    %6 = vector.load %arg4[%c0_5, %c0_6] : memref<1x128xf32, #tpu.memory_space<vmem>>, vector<1x128xf32>
    %c0_7 = arith.constant 0 : index
    %c0_8 = arith.constant 0 : index
    %7 = vector.load %arg5[%c0_7, %c0_8] : memref<1x128xf32, #tpu.memory_space<vmem>>, vector<1x128xf32>
    %cst_9 = arith.constant dense<0.000000e+00> : vector<32xf32>
    %8 = vector.multi_reduction <add>, %5, %cst_9 [1] : vector<32x128xf32> to vector<32xf32>
    %9 = vector.shape_cast %8 : vector<32xf32> to vector<32x1xf32>
    %cst_10 = arith.constant 3.125000e-02 : f32
    %10 = vector.broadcast %cst_10 : f32 to vector<32x1xf32>
    %11 = arith.mulf %9, %10 : vector<32x1xf32>
    %12 = arith.mulf %5, %5 : vector<32x128xf32>
    %cst_11 = arith.constant dense<0.000000e+00> : vector<32xf32>
    %13 = vector.multi_reduction <add>, %12, %cst_11 [1] : vector<32x128xf32> to vector<32xf32>
    %14 = vector.shape_cast %13 : vector<32xf32> to vector<32x1xf32>
    %cst_12 = arith.constant 3.125000e-02 : f32
    %15 = vector.broadcast %cst_12 : f32 to vector<32x1xf32>
    %16 = arith.mulf %14, %15 : vector<32x1xf32>
    %17 = arith.mulf %11, %11 : vector<32x1xf32>
    %18 = arith.subf %16, %17 : vector<32x1xf32>
    %cst_13 = arith.constant 0.000000e+00 : f32
    %19 = vector.broadcast %cst_13 : f32 to vector<32x1xf32>
    %20 = arith.maximumf %18, %19 : vector<32x1xf32>
    %21 = vector.broadcast %11 : vector<32x1xf32> to vector<32x128xf32>
    %22 = arith.subf %5, %21 : vector<32x128xf32>
    %cst_14 = arith.constant 9.99999974E-6 : f32
    %23 = vector.broadcast %cst_14 : f32 to vector<32x1xf32>
    %24 = arith.addf %20, %23 : vector<32x1xf32>
    %25 = math.rsqrt %24 : vector<32x1xf32>
    %26 = vector.broadcast %25 : vector<32x1xf32> to vector<32x128xf32>
    %27 = arith.mulf %22, %26 : vector<32x128xf32>
    %28 = vector.broadcast %6 : vector<1x128xf32> to vector<32x128xf32>
    %29 = arith.mulf %27, %28 : vector<32x128xf32>
    %30 = vector.broadcast %7 : vector<1x128xf32> to vector<32x128xf32>
    %31 = arith.addf %29, %30 : vector<32x128xf32>
    %cst_15 = arith.constant 5.000000e-01 : f32
    %32 = vector.broadcast %cst_15 : f32 to vector<32x128xf32>
    %33 = arith.mulf %32, %31 : vector<32x128xf32>
    %cst_16 = arith.constant 0.707106769 : f32
    %34 = vector.broadcast %cst_16 : f32 to vector<32x128xf32>
    %35 = arith.mulf %31, %34 : vector<32x128xf32>
    %36 = math.erf %35 : vector<32x128xf32>
    %cst_17 = arith.constant 1.000000e+00 : f32
    %37 = vector.broadcast %cst_17 : f32 to vector<32x128xf32>
    %38 = arith.addf %37, %36 : vector<32x128xf32>
    %39 = arith.mulf %33, %38 : vector<32x128xf32>
    %c0_18 = arith.constant 0 : index
    %c0_19 = arith.constant 0 : index
    %40 = vector.load %arg6[%c0_18, %c0_19] : memref<128x128xf32, #tpu.memory_space<vmem>>, vector<128x128xf32>
    %cst_20 = arith.constant dense<0.000000e+00> : vector<32x128xf32>
    %41 = tpu.matmul %39, %40, %cst_20 {dimension_numbers = #tpu.dot_dimension_numbers<[1], [0], [0], [1], [0, 0, 1, 1], [], []>} : vector<32x128xf32>, vector<128x128xf32>, vector<32x128xf32> -> vector<32x128xf32>
    %c0_21 = arith.constant 0 : index
    %c0_22 = arith.constant 0 : index
    %42 = vector.load %arg7[%c0_21, %c0_22] : memref<1x128xf32, #tpu.memory_space<vmem>>, vector<1x128xf32>
    %43 = vector.broadcast %42 : vector<1x128xf32> to vector<32x128xf32>
    %44 = arith.addf %41, %43 : vector<32x128xf32>
    %c0_23 = arith.constant 0 : index
    %c0_24 = arith.constant 0 : index
    %45 = vector.load %arg8[%c0_23, %c0_24] : memref<1x128xf32, #tpu.memory_space<vmem>>, vector<1x128xf32>
    %c0_25 = arith.constant 0 : index
    %c0_26 = arith.constant 0 : index
    %46 = vector.load %arg9[%c0_25, %c0_26] : memref<1x128xf32, #tpu.memory_space<vmem>>, vector<1x128xf32>
    %cst_27 = arith.constant dense<0.000000e+00> : vector<32xf32>
    %47 = vector.multi_reduction <add>, %44, %cst_27 [1] : vector<32x128xf32> to vector<32xf32>
    %48 = vector.shape_cast %47 : vector<32xf32> to vector<32x1xf32>
    %cst_28 = arith.constant 3.125000e-02 : f32
    %49 = vector.broadcast %cst_28 : f32 to vector<32x1xf32>
    %50 = arith.mulf %48, %49 : vector<32x1xf32>
    %51 = arith.mulf %44, %44 : vector<32x128xf32>
    %cst_29 = arith.constant dense<0.000000e+00> : vector<32xf32>
    %52 = vector.multi_reduction <add>, %51, %cst_29 [1] : vector<32x128xf32> to vector<32xf32>
    %53 = vector.shape_cast %52 : vector<32xf32> to vector<32x1xf32>
    %cst_30 = arith.constant 3.125000e-02 : f32
    %54 = vector.broadcast %cst_30 : f32 to vector<32x1xf32>
    %55 = arith.mulf %53, %54 : vector<32x1xf32>
    %56 = arith.mulf %50, %50 : vector<32x1xf32>
    %57 = arith.subf %55, %56 : vector<32x1xf32>
    %cst_31 = arith.constant 0.000000e+00 : f32
    %58 = vector.broadcast %cst_31 : f32 to vector<32x1xf32>
    %59 = arith.maximumf %57, %58 : vector<32x1xf32>
    %60 = vector.broadcast %50 : vector<32x1xf32> to vector<32x128xf32>
    %61 = arith.subf %44, %60 : vector<32x128xf32>
    %cst_32 = arith.constant 9.99999974E-6 : f32
    %62 = vector.broadcast %cst_32 : f32 to vector<32x1xf32>
    %63 = arith.addf %59, %62 : vector<32x1xf32>
    %64 = math.rsqrt %63 : vector<32x1xf32>
    %65 = vector.broadcast %64 : vector<32x1xf32> to vector<32x128xf32>
    %66 = arith.mulf %61, %65 : vector<32x128xf32>
    %67 = vector.broadcast %45 : vector<1x128xf32> to vector<32x128xf32>
    %68 = arith.mulf %66, %67 : vector<32x128xf32>
    %69 = vector.broadcast %46 : vector<1x128xf32> to vector<32x128xf32>
    %70 = arith.addf %68, %69 : vector<32x128xf32>
    %cst_33 = arith.constant 5.000000e-01 : f32
    %71 = vector.broadcast %cst_33 : f32 to vector<32x128xf32>
    %72 = arith.mulf %71, %70 : vector<32x128xf32>
    %cst_34 = arith.constant 0.707106769 : f32
    %73 = vector.broadcast %cst_34 : f32 to vector<32x128xf32>
    %74 = arith.mulf %70, %73 : vector<32x128xf32>
    %75 = math.erf %74 : vector<32x128xf32>
    %cst_35 = arith.constant 1.000000e+00 : f32
    %76 = vector.broadcast %cst_35 : f32 to vector<32x128xf32>
    %77 = arith.addf %76, %75 : vector<32x128xf32>
    %78 = arith.mulf %72, %77 : vector<32x128xf32>
    %c0_36 = arith.constant 0 : index
    %c0_37 = arith.constant 0 : index
    %79 = vector.load %arg10[%c0_36, %c0_37] : memref<32x128xf32, #tpu.memory_space<vmem>>, vector<32x128xf32>
    tpu.vector_store %arg10[%c0_36, %c0_37], %78 {strides = array<i32>} : memref<32x128xf32, #tpu.memory_space<vmem>>, vector<32x128xf32>,
    return
  }
  func.func @transform_0(%arg0: i32) -> (i32, i32) {
    %c0_i32 = arith.constant 0 : i32
    %c0_i32_0 = arith.constant 0 : i32
    return %arg0, %c0_i32 : i32, i32
  }
  func.func @transform_1(%arg0: i32) -> (i32, i32) {
    %c0_i32 = arith.constant 0 : i32
    %c0_i32_0 = arith.constant 0 : i32
    %c0_i32_1 = arith.constant 0 : i32
    return %c0_i32, %c0_i32_0 : i32, i32
  }
  func.func @transform_2(%arg0: i32) -> (i32, i32) {
    %c0_i32 = arith.constant 0 : i32
    %c0_i32_0 = arith.constant 0 : i32
    %c0_i32_1 = arith.constant 0 : i32
    return %c0_i32, %c0_i32_0 : i32, i32
  }
  func.func @transform_3(%arg0: i32) -> (i32, i32) {
    %c0_i32 = arith.constant 0 : i32
    %c0_i32_0 = arith.constant 0 : i32
    %c0_i32_1 = arith.constant 0 : i32
    return %c0_i32, %c0_i32_0 : i32, i32
  }
  func.func @transform_4(%arg0: i32) -> (i32, i32) {
    %c0_i32 = arith.constant 0 : i32
    %c0_i32_0 = arith.constant 0 : i32
    %c0_i32_1 = arith.constant 0 : i32
    return %c0_i32, %c0_i32_0 : i32, i32
  }
  func.func @transform_5(%arg0: i32) -> (i32, i32) {
    %c0_i32 = arith.constant 0 : i32
    %c0_i32_0 = arith.constant 0 : i32
    %c0_i32_1 = arith.constant 0 : i32
    return %c0_i32, %c0_i32_0 : i32, i32
  }
  func.func @transform_6(%arg0: i32) -> (i32, i32) {
    %c0_i32 = arith.constant 0 : i32
    %c0_i32_0 = arith.constant 0 : i32
    %c0_i32_1 = arith.constant 0 : i32
    return %c0_i32, %c0_i32_0 : i32, i32
  }
  func.func @transform_7(%arg0: i32) -> (i32, i32) {
    %c0_i32 = arith.constant 0 : i32
    %c0_i32_0 = arith.constant 0 : i32
    %c0_i32_1 = arith.constant 0 : i32
    return %c0_i32, %c0_i32_0 : i32, i32
  }
  func.func @transform_8(%arg0: i32) -> (i32, i32) {
    %c0_i32 = arith.constant 0 : i32
    %c0_i32_0 = arith.constant 0 : i32
    %c0_i32_1 = arith.constant 0 : i32
    return %c0_i32, %c0_i32_0 : i32, i32
  }
  func.func @transform_9(%arg0: i32) -> (i32, i32) {
    %c0_i32 = arith.constant 0 : i32
    %c0_i32_0 = arith.constant 0 : i32
    return %arg0, %c0_i32 : i32, i32
  }
}

</mosaic_0001>

<llo_original>
// kernel: _impl.1
$region0: #{_impl.1}
  #allocation0 [shape = 'u32[]', space=smem, size = 0x4, offset = 0x4, fixed_abs, tag = 'smem constant byte address 0x4 - core index']
  #allocation1 [shape = 'u32[144,128]{1,0:T(1,128)}', space=vmem, size = 0x12000, scoped, tag = 'internal scratch']
  %s0 = inlined_call_operand.vmem [shape: f32[64,16], index: 0, kind: input, shape index: {}]
  %s1 = inlined_call_operand.vmem [shape: f32[16,128], index: 1, kind: input, shape index: {}]
  %s2 = inlined_call_operand.vmem [shape: f32[1,128], index: 2, kind: input, shape index: {}]
  %s3 = inlined_call_operand.vmem [shape: f32[1,128], index: 3, kind: input, shape index: {}]
  %s4 = inlined_call_operand.vmem [shape: f32[1,128], index: 4, kind: input, shape index: {}]
  %s5 = inlined_call_operand.hbm [shape: f32[128,128], index: 5, kind: input, shape index: {}]
  %s6 = inlined_call_operand.vmem [shape: f32[1,128], index: 6, kind: input, shape index: {}]
  %s7 = inlined_call_operand.vmem [shape: f32[1,128], index: 7, kind: input, shape index: {}]
  %s8 = inlined_call_operand.vmem [shape: f32[1,128], index: 8, kind: input, shape index: {}]
  %s9 = inlined_call_operand.vmem [shape: f32[64,128], index: 9, kind: output, shape index: {}]
  %s10 = sld [smem:[#allocation0]]
  $region73: #{_impl.1} parent=0
    _
  %s12 = ssub.s32 1, %s10
  %s13 = scalar_select 0, %s12, %s10
  $region1: #{_impl.1} parent=0
    #allocation2 [shape = 'u8[65536]{0}', space=vmem, size = 0x10000, scoped, tag = 'input window, operand 5, single buffered']
    #allocation3 [shape = 's32[2]{0}', space=sflag, size = 0x8, scoped, tag = 'scoped memory for _impl.1']
    %14 = vsyncpa [#allocation3], 0
    loop: start=0, step=1, limit=4
    $region2: #{_impl.1} parent=1 // loop_pre_header
      _
    $region3: #{_impl.1} parent=1 // loop_header
      %s16 = sphi 0, %s20
      %p17 = scmp.ge.s32.totalorder %s16, 4
      %s26 = sphi 0, %s28
      %s29 = sphi 0, %s26
      %s30 = sphi 0, %s29
      %s46 = sphi 0, %s30
      %s50 = sphi 0, %s50
      %s52 = sphi 0, %s50
      %s53 = sphi 0, %s52
      %s67 = sphi 0, %s53
      %s71 = sphi 0, %s71
      %s73 = sphi 0, %s71
      %s74 = sphi 0, %s73
      %s88 = sphi 0, %s74
      %s92 = sphi 0, %s92
      %s94 = sphi 0, %s92
      %s95 = sphi 0, %s94
      %s109 = sphi 0, %s95
      %s113 = sphi 0, %s113
      %s115 = sphi 0, %s113
      %s116 = sphi 0, %s115
      %s130 = sphi 0, %s116
      %s134 = sphi 0, %s134
      %s136 = sphi 0, %s134
      %s137 = sphi 0, %s136
      %s151 = sphi 0, %s137
      %s155 = sphi 0, %s155
      %s157 = sphi 0, %s155
      %s158 = sphi 0, %s157
      %s172 = sphi 0, %s158
      %s176 = sphi 0, %s176
      %s178 = sphi 0, %s176
      %s179 = sphi 0, %s178
      %s193 = sphi 0, %s179
      %s197 = sphi 0, %s197
      %s199 = sphi 0, %s197
      %s200 = sphi 0, %s199
      %s214 = sphi 0, %s200
      %s220 = sphi 0, %s222
      %s223 = sphi 0, %s220
      %s224 = sphi 0, %s223
      %s240 = sphi 0, %s224
    $region4: #{_impl.1} parent=1 // loop_header_branch
      %19 = sbr.rel (%p17) target = $region8
    $region5: #{_impl.1} parent=1 // loop_body
      %s21 = ssub.s32 %s16, 1
      %s22 = ssub.s32 %s16, 2
      %s23 = sadd.s32 %s16, 1
      %s24 = ssub.s32 %s16, %s23
      %p25 = scmp.eq.s32.totalorder %s24, 0
      %s27 = sadd.s32 %s26, 1
      %s28 = scalar_select %p25, %s26, %s27
      %p31 = pneg %p25
      %p32 = scmp.eq.s32.totalorder %s16, 1
      %p33 = por %p31, %p32
      %p34 = scmp.ne.s32.totalorder %s26, %s29
      %p35 = scmp.eq.s32.totalorder %s16, 0
      %p36 = por %p34, %p35
      %p37 = scmp.ne.s32.totalorder %s26, %s29
      %p38 = scmp.eq.s32.totalorder %s21, 1
      %p39 = por %p37, %p38
      %p40 = scmp.ne.s32.totalorder %s29, %s30
      %p41 = scmp.eq.s32.totalorder %s21, 0
      %p42 = por %p40, %p41
      %p43 = scmp.ne.s32.totalorder %s29, %s30
      %p44 = scmp.eq.s32.totalorder %s22, 1
      %p45 = por %p43, %p44
      %p47 = scmp.ne.s32.totalorder %s30, %s46
      %p48 = scmp.eq.s32.totalorder %s22, 0
      %p49 = por %p47, %p48
      %s51 = sadd.s32 %s50, 1
      %p54 = scmp.eq.s32.totalorder %s16, 1
      %p55 = scmp.ne.s32.totalorder %s50, %s52
      %p56 = scmp.eq.s32.totalorder %s16, 0
      %p57 = por %p55, %p56
      %p58 = scmp.ne.s32.totalorder %s50, %s52
      %p59 = scmp.eq.s32.totalorder %s21, 1
      %p60 = por %p58, %p59
      %p61 = scmp.ne.s32.totalorder %s52, %s53
      %p62 = scmp.eq.s32.totalorder %s21, 0
      %p63 = por %p61, %p62
      %p64 = scmp.ne.s32.totalorder %s52, %s53
      %p65 = scmp.eq.s32.totalorder %s22, 1
      %p66 = por %p64, %p65
      %p68 = scmp.ne.s32.totalorder %s53, %s67
      %p69 = scmp.eq.s32.totalorder %s22, 0
      %p70 = por %p68, %p69
      %s72 = sadd.s32 %s71, 1
      %p75 = scmp.eq.s32.totalorder %s16, 1
      %p76 = scmp.ne.s32.totalorder %s71, %s73
      %p77 = scmp.eq.s32.totalorder %s16, 0
      %p78 = por %p76, %p77
      %p79 = scmp.ne.s32.totalorder %s71, %s73
      %p80 = scmp.eq.s32.totalorder %s21, 1
      %p81 = por %p79, %p80
      %p82 = scmp.ne.s32.totalorder %s73, %s74
      %p83 = scmp.eq.s32.totalorder %s21, 0
      %p84 = por %p82, %p83
      %p85 = scmp.ne.s32.totalorder %s73, %s74
      %p86 = scmp.eq.s32.totalorder %s22, 1
      %p87 = por %p85, %p86
      %p89 = scmp.ne.s32.totalorder %s74, %s88
      %p90 = scmp.eq.s32.totalorder %s22, 0
      %p91 = por %p89, %p90
      %s93 = sadd.s32 %s92, 1
      %p96 = scmp.eq.s32.totalorder %s16, 1
      %p97 = scmp.ne.s32.totalorder %s92, %s94
      %p98 = scmp.eq.s32.totalorder %s16, 0
      %p99 = por %p97, %p98
      %p100 = scmp.ne.s32.totalorder %s92, %s94
      %p101 = scmp.eq.s32.totalorder %s21, 1
      %p102 = por %p100, %p101
      %p103 = scmp.ne.s32.totalorder %s94, %s95
      %p104 = scmp.eq.s32.totalorder %s21, 0
      %p105 = por %p103, %p104
      %p106 = scmp.ne.s32.totalorder %s94, %s95
      %p107 = scmp.eq.s32.totalorder %s22, 1
      %p108 = por %p106, %p107
      %p110 = scmp.ne.s32.totalorder %s95, %s109
      %p111 = scmp.eq.s32.totalorder %s22, 0
      %p112 = por %p110, %p111
      %s114 = sadd.s32 %s113, 1
      %p117 = scmp.eq.s32.totalorder %s16, 1
      %p118 = scmp.ne.s32.totalorder %s113, %s115
      %p119 = scmp.eq.s32.totalorder %s16, 0
      %p120 = por %p118, %p119
      %p121 = scmp.ne.s32.totalorder %s113, %s115
      %p122 = scmp.eq.s32.totalorder %s21, 1
      %p123 = por %p121, %p122
      %p124 = scmp.ne.s32.totalorder %s115, %s116
      %p125 = scmp.eq.s32.totalorder %s21, 0
      %p126 = por %p124, %p125
      %p127 = scmp.ne.s32.totalorder %s115, %s116
      %p128 = scmp.eq.s32.totalorder %s22, 1
      %p129 = por %p127, %p128
      %p131 = scmp.ne.s32.totalorder %s116, %s130
      %p132 = scmp.eq.s32.totalorder %s22, 0
      %p133 = por %p131, %p132
      %s135 = sadd.s32 %s134, 1
      %p138 = scmp.eq.s32.totalorder %s16, 1
      %p139 = scmp.ne.s32.totalorder %s134, %s136
      %p140 = scmp.eq.s32.totalorder %s16, 0
      %p141 = por %p139, %p140
      %p142 = scmp.ne.s32.totalorder %s134, %s136
      %p143 = scmp.eq.s32.totalorder %s21, 1
      %p144 = por %p142, %p143
      %p145 = scmp.ne.s32.totalorder %s136, %s137
      %p146 = scmp.eq.s32.totalorder %s21, 0
      %p147 = por %p145, %p146
      %p148 = scmp.ne.s32.totalorder %s136, %s137
      %p149 = scmp.eq.s32.totalorder %s22, 1
      %p150 = por %p148, %p149
      %p152 = scmp.ne.s32.totalorder %s137, %s151
      %p153 = scmp.eq.s32.totalorder %s22, 0
      %p154 = por %p152, %p153
      %s156 = sadd.s32 %s155, 1
      %p159 = scmp.eq.s32.totalorder %s16, 1
      %p160 = scmp.ne.s32.totalorder %s155, %s157
      %p161 = scmp.eq.s32.totalorder %s16, 0
      %p162 = por %p160, %p161
      %p163 = scmp.ne.s32.totalorder %s155, %s157
      %p164 = scmp.eq.s32.totalorder %s21, 1
      %p165 = por %p163, %p164
      %p166 = scmp.ne.s32.totalorder %s157, %s158
      %p167 = scmp.eq.s32.totalorder %s21, 0
      %p168 = por %p166, %p167
      %p169 = scmp.ne.s32.totalorder %s157, %s158
      %p170 = scmp.eq.s32.totalorder %s22, 1
      %p171 = por %p169, %p170
      %p173 = scmp.ne.s32.totalorder %s158, %s172
      %p174 = scmp.eq.s32.totalorder %s22, 0
      %p175 = por %p173, %p174
      %s177 = sadd.s32 %s176, 1
      %p180 = scmp.eq.s32.totalorder %s16, 1
      %p181 = scmp.ne.s32.totalorder %s176, %s178
      %p182 = scmp.eq.s32.totalorder %s16, 0
      %p183 = por %p181, %p182
      %p184 = scmp.ne.s32.totalorder %s176, %s178
      %p185 = scmp.eq.s32.totalorder %s21, 1
      %p186 = por %p184, %p185
      %p187 = scmp.ne.s32.totalorder %s178, %s179
      %p188 = scmp.eq.s32.totalorder %s21, 0
      %p189 = por %p187, %p188
      %p190 = scmp.ne.s32.totalorder %s178, %s179
      %p191 = scmp.eq.s32.totalorder %s22, 1
      %p192 = por %p190, %p191
      %p194 = scmp.ne.s32.totalorder %s179, %s193
      %p195 = scmp.eq.s32.totalorder %s22, 0
      %p196 = por %p194, %p195
      %s198 = sadd.s32 %s197, 1
      %p201 = scmp.eq.s32.totalorder %s16, 1
      %p202 = scmp.ne.s32.totalorder %s197, %s199
      %p203 = scmp.eq.s32.totalorder %s16, 0
      %p204 = por %p202, %p203
      %p205 = scmp.ne.s32.totalorder %s197, %s199
      %p206 = scmp.eq.s32.totalorder %s21, 1
      %p207 = por %p205, %p206
      %p208 = scmp.ne.s32.totalorder %s199, %s200
      %p209 = scmp.eq.s32.totalorder %s21, 0
      %p210 = por %p208, %p209
      %p211 = scmp.ne.s32.totalorder %s199, %s200
      %p212 = scmp.eq.s32.totalorder %s22, 1
      %p213 = por %p211, %p212
      %p215 = scmp.ne.s32.totalorder %s200, %s214
      %p216 = scmp.eq.s32.totalorder %s22, 0
      %p217 = por %p215, %p216
      %s218 = ssub.s32 %s16, %s23
      %p219 = scmp.eq.s32.totalorder %s218, 0
      %s221 = sadd.s32 %s220, 1
      %s222 = scalar_select %p219, %s220, %s221
      %p225 = pneg %p219
      %p226 = scmp.eq.s32.totalorder %s16, 1
      %p227 = por %p225, %p226
      %p228 = scmp.ne.s32.totalorder %s220, %s223
      %p229 = scmp.eq.s32.totalorder %s16, 0
      %p230 = por %p228, %p229
      %p231 = scmp.ne.s32.totalorder %s220, %s223
      %p232 = scmp.eq.s32.totalorder %s21, 1
      %p233 = por %p231, %p232
      %p234 = scmp.ne.s32.totalorder %s223, %s224
      %p235 = scmp.eq.s32.totalorder %s21, 0
      %p236 = por %p234, %p235
      %p237 = scmp.ne.s32.totalorder %s223, %s224
      %p238 = scmp.eq.s32.totalorder %s22, 1
      %p239 = por %p237, %p238
      %p241 = scmp.ne.s32.totalorder %s224, %s240
      %p242 = scmp.eq.s32.totalorder %s22, 0
      %p243 = por %p241, %p242
      %p244 = scmp.le.s32.totalorder 1, %s16
      %p245 = scmp.lt.s32.totalorder %s16, 3
      %p246 = pnand %p244, %p245
      %p247 = pneg %p246
      // Predicated region
      $region9: #{_impl.1} parent=5 // pred_check
        _
      $region10: #{_impl.1} parent=5 // pred_check_branch
        %249 = sbr.rel (%p246) target = $region12
      $region11: #{_impl.1} parent=5 // pred_region
        %s250 = ssub.s32 %s16, 1
        // Predicated region
        $region13: #{_impl.1} parent=11 // pred_check
          %p251 = pneg %p63
        $region14: #{_impl.1} parent=11 // pred_check_branch
          %253 = sbr.rel (%p251) target = $region16
        $region15: #{_impl.1} parent=11 // pred_region
          _
        $region16: #{_impl.1} parent=11 // pred_fallthru
          _
        // Predicated region
        $region17: #{_impl.1} parent=11 // pred_check
          %p254 = pneg %p84
        $region18: #{_impl.1} parent=11 // pred_check_branch
          %256 = sbr.rel (%p254) target = $region20
        $region19: #{_impl.1} parent=11 // pred_region
          _
        $region20: #{_impl.1} parent=11 // pred_fallthru
          _
        // Predicated region
        $region21: #{_impl.1} parent=11 // pred_check
          %p257 = pneg %p105
        $region22: #{_impl.1} parent=11 // pred_check_branch
          %259 = sbr.rel (%p257) target = $region24
        $region23: #{_impl.1} parent=11 // pred_region
          _
        $region24: #{_impl.1} parent=11 // pred_fallthru
          _
        // Predicated region
        $region25: #{_impl.1} parent=11 // pred_check
          %p260 = pneg %p126
        $region26: #{_impl.1} parent=11 // pred_check_branch
          %262 = sbr.rel (%p260) target = $region28
        $region27: #{_impl.1} parent=11 // pred_region
          _
        $region28: #{_impl.1} parent=11 // pred_fallthru
          _
        // Predicated region
        $region29: #{_impl.1} parent=11 // pred_check
          %p263 = pneg %p147
        $region30: #{_impl.1} parent=11 // pred_check_branch
          %265 = sbr.rel (%p263) target = $region32
        $region31: #{_impl.1} parent=11 // pred_region
          %s267 = ssub.s32 2048, 2048
          %268 = vsyncadd [#allocation3], %s267
          %s269 = sshll.u32 [#allocation2], 4
          %s270 = int_to_ptr.vmem [resolvable:$true] %s269
          %275 = dma.hbm_to_vmem [thread:$0]  %s5, 2048, %s270, [#allocation3], 128, 128, 8
        $region32: #{_impl.1} parent=11 // pred_fallthru
          _
        // Predicated region
        $region33: #{_impl.1} parent=11 // pred_check
          %p276 = pneg %p168
        $region34: #{_impl.1} parent=11 // pred_check_branch
          %278 = sbr.rel (%p276) target = $region36
        $region35: #{_impl.1} parent=11 // pred_region
          _
        $region36: #{_impl.1} parent=11 // pred_fallthru
          _
        // Predicated region
        $region37: #{_impl.1} parent=11 // pred_check
          %p279 = pneg %p189
        $region38: #{_impl.1} parent=11 // pred_check_branch
          %281 = sbr.rel (%p279) target = $region40
        $region39: #{_impl.1} parent=11 // pred_region
          _
        $region40: #{_impl.1} parent=11 // pred_fallthru
          _
        // Predicated region
        $region41: #{_impl.1} parent=11 // pred_check
          %p282 = pneg %p210
        $region42: #{_impl.1} parent=11 // pred_check_branch
          %284 = sbr.rel (%p282) target = $region44
        $region43: #{_impl.1} parent=11 // pred_region
          _
        $region44: #{_impl.1} parent=11 // pred_fallthru
          _
      $region12: #{_impl.1} parent=5 // pred_fallthru
        _
      %p285 = scmp.lt.s32.totalorder %s16, 2
      // Predicated region
      $region45: #{_impl.1} parent=5 // pred_check
        %p286 = pneg %p285
      $region46: #{_impl.1} parent=5 // pred_check_branch
        %288 = sbr.rel (%p286) target = $region48
      $region47: #{_impl.1} parent=5 // pred_region
        // Predicated region
        $region49: #{_impl.1} parent=47 // pred_check
          %p289 = pneg %p36
        $region50: #{_impl.1} parent=47 // pred_check_branch
          %291 = sbr.rel (%p289) target = $region52
        $region51: #{_impl.1} parent=47 // pred_region
          %s292 = smul.u32 4, %s16
          %p293 = scmp.lt.s32.totalorder %s292, 7
          %s294 = scalar_select %p293, %s292, 7
          %s295 = smul.addr %s294, 8
          %s296 = scalar_lea.vmem %s0, %s295
          %s297 = smul.u32 4, %s16
        $region52: #{_impl.1} parent=47 // pred_fallthru
          _
      $region48: #{_impl.1} parent=5 // pred_fallthru
        _
      %p298 = scmp.le.s32.totalorder 1, %s16
      %p299 = scmp.lt.s32.totalorder %s16, 3
      %p300 = pnand %p298, %p299
      %p301 = pneg %p300
      // Predicated region
      $region53: #{_impl.1} parent=5 // pred_check
        _
      $region54: #{_impl.1} parent=5 // pred_check_branch
        %303 = sbr.rel (%p300) target = $region56
      $region55: #{_impl.1} parent=5 // pred_region
        %s304 = ssub.s32 %s16, 1
        // Predicated region
        $region57: #{_impl.1} parent=55 // pred_check
          %p305 = pneg %p147
        $region58: #{_impl.1} parent=55 // pred_check_branch
          %307 = sbr.rel (%p305) target = $region60
        $region59: #{_impl.1} parent=55 // pred_region
          %308 = dma.done [#allocation3], 2048
        $region60: #{_impl.1} parent=55 // pred_fallthru
          _
        %s309 = smul.u32 4, %s21
        %p310 = scmp.lt.s32.totalorder %s309, 7
        %s311 = scalar_select %p310, %s309, 7
        %s312 = smul.addr %s311, 8
        %s313 = scalar_lea.vmem %s0, %s312
        %p314 = pneg %p42
        %p315 = pneg %p39
        %p316 = pneg %p63
        %p317 = pneg %p60
        %p318 = pneg %p84
        %p319 = pneg %p81
        %p320 = pneg %p105
        %p321 = pneg %p102
        %p322 = pneg %p126
        %p323 = pneg %p123
        %p324 = pneg %p147
        %p325 = pneg %p144
        %p326 = pneg %p168
        %p327 = pneg %p165
        %p328 = pneg %p189
        %p329 = pneg %p186
        %p330 = pneg %p210
        %p331 = pneg %p207
        %p332 = pneg %p236
        %p333 = pneg %p233
        %s334 = smul.u32 4, %s21
        %p335 = scmp.lt.s32.totalorder %s334, 7
        %s336 = scalar_select %p335, %s334, 7
        %s337 = smul.addr %s336, 8
        %s338 = scalar_lea.vmem %s9, %s337
        %s339 = smul.u32 4, %s21
        %p340 = scmp.lt.s32.totalorder %s339, 7
        %s341 = scalar_select %p340, %s339, 7
        %s342 = smul.addr %s341, 8
        %s343 = scalar_lea.vmem %s0, %s342
        %s344 = smul.u32 4, %s21
        %s345 = smul.u32 4, %s21
        %p346 = scmp.lt.s32.totalorder %s345, 7
        %s347 = scalar_select %p346, %s345, 7
        %s348 = smul.addr %s347, 8
        %s349 = scalar_lea.vmem %s9, %s348
        %s350 = smul.u32 4, %s21
        %v351 = vld [vmem:[%s1] sm:$0xff]
        %v352 = vld [vmem:[%s1 + $0x8] sm:$0xff]
        %v353 = vld [vmem:[%s343] sm:$0xff]
        %v354 = vld [vmem:[%s343 + $0x8] sm:$0xff]
        %v355 = vld [vmem:[%s343 + $0x10] sm:$0xff]
        %v356 = vld [vmem:[%s343 + $0x18] sm:$0xff]
        %v357 = vld [vmem:[%s2] sm:$0x1]
        %v359 = vlaneseq
        %v360 = vshrl.u32 %v359, 7
        %v361 = vsub.s32 0, %v360
        %v362 = vrot.slane %v357, %v361
        %vm364 = vcmask 130048
        %v366 = vsel %vm364, %v353, 0
        %v369 = vsel %vm364, %v354, 0
        %v372 = vsel %vm364, %v355, 0
        %v375 = vsel %vm364, %v356, 0
        %377 = vmatprep.subr.mxu0 0.0
        %378 = vmatpush1.msra.mxu0 %v351
        %379 = vmatprep.subr.mxu0 0.0
        %380 = vmatpush1.msra.mxu0 %v352
        %381 = vmatprep.subr.mxu0 0.0
        %382 = vmatpush1.msra.mxu0 0.0
        %383 = vmatprep.subr.mxu0 0.0
        %384 = vmatpush1.msra.mxu0 0.0
        %385 = vmatprep.subr.mxu0 0.0
        %386 = vmatpush1.msra.mxu0 0.0
        %387 = vmatprep.subr.mxu0 0.0
        %388 = vmatpush1.msra.mxu0 0.0
        %389 = vmatprep.subr.mxu0 0.0
        %390 = vmatpush1.msra.mxu0 0.0
        %391 = vmatprep.subr.mxu0 0.0
        %392 = vmatpush1.msra.mxu0 0.0
        %393 = vmatprep.subr.mxu0 0.0
        %394 = vmatpush1.msra.mxu0 0.0
        %395 = vmatprep.subr.mxu0 0.0
        %396 = vmatpush1.msra.mxu0 0.0
        %397 = vmatprep.subr.mxu0 0.0
        %398 = vmatpush1.msra.mxu0 0.0
        %399 = vmatprep.subr.mxu0 0.0
        %400 = vmatpush1.msra.mxu0 0.0
        %401 = vmatprep.subr.mxu0 0.0
        %402 = vmatpush1.msra.mxu0 0.0
        %403 = vmatprep.subr.mxu0 0.0
        %404 = vmatpush1.msra.mxu0 0.0
        %405 = vmatprep.subr.mxu0 0.0
        %406 = vmatpush1.msra.mxu0 0.0
        %407 = vmatprep.subr.mxu0 0.0
        %408 = vmatpush1.msra.mxu0 0.0
        %409 = vmatprep.subr.mxu0 0.0
        %410 = vmatpush1.msra.mxu0 0.0
        %411 = vmatprep.subr.mxu0 0.0
        %412 = vmatpush1.msra.mxu0 0.0
        %413 = vmatprep.subr.mxu0 0.0
        %414 = vmatpush1.msra.mxu0 0.0
        %415 = vmatprep.subr.mxu0 0.0
        %416 = vmatpush1.msra.mxu0 0.0
        %417 = vmatprep.subr.mxu0 0.0
        %418 = vmatpush1.msra.mxu0 0.0
        %419 = vmatprep.subr.mxu0 0.0
        %420 = vmatpush1.msra.mxu0 0.0
        %421 = vmatprep.subr.mxu0 0.0
        %422 = vmatpush1.msra.mxu0 0.0
        %423 = vmatprep.subr.mxu0 0.0
        %424 = vmatpush1.msra.mxu0 0.0
        %425 = vmatprep.subr.mxu0 0.0
        %426 = vmatpush1.msra.mxu0 0.0
        %427 = vmatprep.subr.mxu0 0.0
        %428 = vmatpush1.msra.mxu0 0.0
        %429 = vmatprep.subr.mxu0 0.0
        %430 = vmatpush1.msra.mxu0 0.0
        %431 = vmatprep.subr.mxu0 0.0
        %432 = vmatpush1.msra.mxu0 0.0
        %433 = vmatprep.subr.mxu0 0.0
        %434 = vmatpush1.msra.mxu0 0.0
        %435 = vmatprep.subr.mxu0 0.0
        %436 = vmatpush1.msra.mxu0 0.0
        %437 = vmatprep.subr.mxu0 0.0
        %438 = vmatpush1.msra.mxu0 0.0
        %439 = vmatprep.subr.mxu0 0.0
        %440 = vmatpush1.msra.mxu0 0.0
        %441 = vmatprep.mubr.f32.mxu0 0.0
        %442 = vmatmul.mubr.f32.gmra.mrb[0].mxu0 %v366
        %v443 = vpop.f32.mrb[0].mxu0
        %v444 = vadd.f32 %v362, %v443
        %v445 = vpop.f32.mrb[0].mxu0
        %446 = vmatprep.mubr.f32.mxu0 0.0
        %447 = vmatmul.mubr.f32.gmra.mrb[0].mxu0 %v369
        %v448 = vpop.f32.mrb[0].mxu0
        %v449 = vadd.f32 %v362, %v448
        %v450 = vpop.f32.mrb[0].mxu0
        %451 = vmatprep.mubr.f32.mxu0 0.0
        %452 = vmatmul.mubr.f32.gmra.mrb[0].mxu0 %v372
        %v453 = vpop.f32.mrb[0].mxu0
        %v454 = vadd.f32 %v362, %v453
        %v455 = vpop.f32.mrb[0].mxu0
        %456 = vmatprep.mubr.f32.mxu0 0.0
        %457 = vmatmul.mubr.f32.gmra.mrb[0].mxu0 %v375
        %v458 = vpop.f32.mrb[0].mxu0
        %v459 = vadd.f32 %v362, %v458
        %v460 = vpop.f32.mrb[0].mxu0
        %461 = vdwg.mxu0
        %v462 = vld [vmem:[%s3] sm:$0x1]
        %v463 = vld [vmem:[%s4] sm:$0x1]
        %464 = vadd.xlane.f32.xlu0 %v444
        %v465 = vpop.xlane.xlu0 %464
        %466 = vadd.xlane.f32.xlu0 %v449
        %v467 = vpop.xlane.xlu0 %466
        %468 = vadd.xlane.f32.xlu0 %v454
        %v469 = vpop.xlane.xlu0 %468
        %470 = vadd.xlane.f32.xlu0 %v459
        %v471 = vpop.xlane.xlu0 %470
        %v472 = vmul.f32 %v465, 0.03125
        %v473 = vmul.f32 %v467, 0.03125
        %v474 = vmul.f32 %v469, 0.03125
        %v475 = vmul.f32 %v471, 0.03125
        %v476 = vmul.f32 %v444, %v444
        %v477 = vmul.f32 %v449, %v449
        %v478 = vmul.f32 %v454, %v454
        %v479 = vmul.f32 %v459, %v459
        %480 = vadd.xlane.f32.xlu0 %v476
        %v481 = vpop.xlane.xlu0 %480
        %482 = vadd.xlane.f32.xlu0 %v477
        %v483 = vpop.xlane.xlu0 %482
        %484 = vadd.xlane.f32.xlu0 %v478
        %v485 = vpop.xlane.xlu0 %484
        %486 = vadd.xlane.f32.xlu0 %v479
        %v487 = vpop.xlane.xlu0 %486
        %v488 = vmul.f32 %v481, 0.03125
        %v489 = vmul.f32 %v483, 0.03125
        %v490 = vmul.f32 %v485, 0.03125
        %v491 = vmul.f32 %v487, 0.03125
        %v492 = vmul.f32 %v472, %v472
        %v493 = vmul.f32 %v473, %v473
        %v494 = vmul.f32 %v474, %v474
        %v495 = vmul.f32 %v475, %v475
        %v496 = vsub.f32 %v488, %v492
        %v497 = vsub.f32 %v489, %v493
        %v498 = vsub.f32 %v490, %v494
        %v499 = vsub.f32 %v491, %v495
        %v500 = vmax.f32 %v496, 0.0
        %v501 = vmax.f32 %v497, 0.0
        %v502 = vmax.f32 %v498, 0.0
        %v503 = vmax.f32 %v499, 0.0
        %v504 = vsub.f32 %v444, %v472
        %v505 = vsub.f32 %v449, %v473
        %v506 = vsub.f32 %v454, %v474
        %v507 = vsub.f32 %v459, %v475
        %v508 = vadd.f32 %v500, 1e-05
        %v509 = vadd.f32 %v501, 1e-05
        %v510 = vadd.f32 %v502, 1e-05
        %v511 = vadd.f32 %v503, 1e-05
        %v512 = vrsqrt.pop %v508
        %v513 = vrsqrt.pop %v509
        %v514 = vrsqrt.pop %v510
        %v515 = vrsqrt.pop %v511
        %v516 = vmul.f32 %v504, %v512
        %v517 = vmul.f32 %v505, %v513
        %v518 = vmul.f32 %v506, %v514
        %v519 = vmul.f32 %v507, %v515
        %v521 = vlaneseq
        %v522 = vshrl.u32 %v521, 7
        %v523 = vsub.s32 0, %v522
        %v524 = vrot.slane %v462, %v523
        %v526 = vmul.f32 %v516, %v524
        %v527 = vmul.f32 %v517, %v524
        %v528 = vmul.f32 %v518, %v524
        %v529 = vmul.f32 %v519, %v524
        %v531 = vlaneseq
        %v532 = vshrl.u32 %v531, 7
        %v533 = vsub.s32 0, %v532
        %v534 = vrot.slane %v463, %v533
        %v536 = vadd.f32 %v526, %v534
        %v537 = vadd.f32 %v527, %v534
        %v538 = vadd.f32 %v528, %v534
        %v539 = vadd.f32 %v529, %v534
        %v540 = vmul.f32 %v536, 0.5
        %v541 = vmul.f32 %v537, 0.5
        %v542 = vmul.f32 %v538, 0.5
        %v543 = vmul.f32 %v539, 0.5
        %v544 = vmul.f32 %v536, 0.70710677
        %v545 = vmul.f32 %v537, 0.70710677
        %v546 = vmul.f32 %v538, 0.70710677
        %v547 = vmul.f32 %v539, 0.70710677
        %v548 = verf.f32.pop %v544
        %v549 = verf.f32.pop %v545
        %v550 = verf.f32.pop %v546
        %v551 = verf.f32.pop %v547
        %v552 = vadd.f32 %v548, 1.0
        %v553 = vadd.f32 %v549, 1.0
        %v554 = vadd.f32 %v550, 1.0
        %v555 = vadd.f32 %v551, 1.0
        %v556 = vmul.f32 %v540, %v552
        %v557 = vmul.f32 %v541, %v553
        %v558 = vmul.f32 %v542, %v554
        %v559 = vmul.f32 %v543, %v555
        %v560 = vld [vmem:[#allocation2] sm:$0xff]
        %v561 = vld [vmem:[#allocation2 + $0x8] sm:$0xff]
        %v562 = vld [vmem:[#allocation2 + $0x10] sm:$0xff]
        %v563 = vld [vmem:[#allocation2 + $0x18] sm:$0xff]
        %v564 = vld [vmem:[#allocation2 + $0x20] sm:$0xff]
        %v565 = vld [vmem:[#allocation2 + $0x28] sm:$0xff]
        %v566 = vld [vmem:[#allocation2 + $0x30] sm:$0xff]
        %v567 = vld [vmem:[#allocation2 + $0x38] sm:$0xff]
        %v568 = vld [vmem:[#allocation2 + $0x40] sm:$0xff]
        %v569 = vld [vmem:[#allocation2 + $0x48] sm:$0xff]
        %v570 = vld [vmem:[#allocation2 + $0x50] sm:$0xff]
        %v571 = vld [vmem:[#allocation2 + $0x58] sm:$0xff]
        %v572 = vld [vmem:[#allocation2 + $0x60] sm:$0xff]
        %v573 = vld [vmem:[#allocation2 + $0x68] sm:$0xff]
        %v574 = vld [vmem:[#allocation2 + $0x70] sm:$0xff]
        %v575 = vld [vmem:[#allocation2 + $0x78] sm:$0xff]
        %v576 = vld [vmem:[%s6] sm:$0x1]
        %v578 = vlaneseq
        %v579 = vshrl.u32 %v578, 7
        %v580 = vsub.s32 0, %v579
        %v581 = vrot.slane %v576, %v580
        %583 = vmatprep.subr.mxu0 0.0
        %584 = vmatpush1.msra.mxu0 %v560
        %585 = vmatprep.subr.mxu0 0.0
        %586 = vmatpush1.msra.mxu0 %v561
        %587 = vmatprep.subr.mxu0 0.0
        %588 = vmatpush1.msra.mxu0 %v562
        %589 = vmatprep.subr.mxu0 0.0
        %590 = vmatpush1.msra.mxu0 %v563
        %591 = vmatprep.subr.mxu0 0.0
        %592 = vmatpush1.msra.mxu0 %v564
        %593 = vmatprep.subr.mxu0 0.0
        %594 = vmatpush1.msra.mxu0 %v565
        %595 = vmatprep.subr.mxu0 0.0
        %596 = vmatpush1.msra.mxu0 %v566
        %597 = vmatprep.subr.mxu0 0.0
        %598 = vmatpush1.msra.mxu0 %v567
        %599 = vmatprep.subr.mxu0 0.0
        %600 = vmatpush1.msra.mxu0 %v568
        %601 = vmatprep.subr.mxu0 0.0
        %602 = vmatpush1.msra.mxu0 %v569
        %603 = vmatprep.subr.mxu0 0.0
        %604 = vmatpush1.msra.mxu0 %v570
        %605 = vmatprep.subr.mxu0 0.0
        %606 = vmatpush1.msra.mxu0 %v571
        %607 = vmatprep.subr.mxu0 0.0
        %608 = vmatpush1.msra.mxu0 %v572
        %609 = vmatprep.subr.mxu0 0.0
        %610 = vmatpush1.msra.mxu0 %v573
        %611 = vmatprep.subr.mxu0 0.0
        %612 = vmatpush1.msra.mxu0 %v574
        %613 = vmatprep.subr.mxu0 0.0
        %614 = vmatpush1.msra.mxu0 %v575
        %615 = vmatprep.subr.mxu0 0.0
        %616 = vmatpush1.msra.mxu0 0.0
        %617 = vmatprep.subr.mxu0 0.0
        %618 = vmatpush1.msra.mxu0 0.0
        %619 = vmatprep.subr.mxu0 0.0
        %620 = vmatpush1.msra.mxu0 0.0
        %621 = vmatprep.subr.mxu0 0.0
        %622 = vmatpush1.msra.mxu0 0.0
        %623 = vmatprep.subr.mxu0 0.0
        %624 = vmatpush1.msra.mxu0 0.0
        %625 = vmatprep.subr.mxu0 0.0
        %626 = vmatpush1.msra.mxu0 0.0
        %627 = vmatprep.subr.mxu0 0.0
        %628 = vmatpush1.msra.mxu0 0.0
        %629 = vmatprep.subr.mxu0 0.0
        %630 = vmatpush1.msra.mxu0 0.0
        %631 = vmatprep.subr.mxu0 0.0
        %632 = vmatpush1.msra.mxu0 0.0
        %633 = vmatprep.subr.mxu0 0.0
        %634 = vmatpush1.msra.mxu0 0.0
        %635 = vmatprep.subr.mxu0 0.0
        %636 = vmatpush1.msra.mxu0 0.0
        %637 = vmatprep.subr.mxu0 0.0
        %638 = vmatpush1.msra.mxu0 0.0
        %639 = vmatprep.subr.mxu0 0.0
        %640 = vmatpush1.msra.mxu0 0.0
        %641 = vmatprep.subr.mxu0 0.0
        %642 = vmatpush1.msra.mxu0 0.0
        %643 = vmatprep.subr.mxu0 0.0
        %644 = vmatpush1.msra.mxu0 0.0
        %645 = vmatprep.subr.mxu0 0.0
        %646 = vmatpush1.msra.mxu0 0.0
        %647 = vmatprep.mubr.f32.mxu0 0.0
        %648 = vmatmul.mubr.f32.gmra.mrb[0].mxu0 %v556
        %v649 = vpop.f32.mrb[0].mxu0
        %v650 = vadd.f32 %v581, %v649
        %v651 = vpop.f32.mrb[0].mxu0
        %652 = vmatprep.mubr.f32.mxu0 0.0
        %653 = vmatmul.mubr.f32.gmra.mrb[0].mxu0 %v557
        %v654 = vpop.f32.mrb[0].mxu0
        %v655 = vadd.f32 %v581, %v654
        %v656 = vpop.f32.mrb[0].mxu0
        %657 = vmatprep.mubr.f32.mxu0 0.0
        %658 = vmatmul.mubr.f32.gmra.mrb[0].mxu0 %v558
        %v659 = vpop.f32.mrb[0].mxu0
        %v660 = vadd.f32 %v581, %v659
        %v661 = vpop.f32.mrb[0].mxu0
        %662 = vmatprep.mubr.f32.mxu0 0.0
        %663 = vmatmul.mubr.f32.gmra.mrb[0].mxu0 %v559
        %v664 = vpop.f32.mrb[0].mxu0
        %v665 = vadd.f32 %v581, %v664
        %v666 = vpop.f32.mrb[0].mxu0
        %667 = vdwg.mxu0
        %v668 = vld [vmem:[%s7] sm:$0x1]
        %v669 = vld [vmem:[%s8] sm:$0x1]
        %670 = vadd.xlane.f32.xlu0 %v650
        %v671 = vpop.xlane.xlu0 %670
        %672 = vadd.xlane.f32.xlu0 %v655
        %v673 = vpop.xlane.xlu0 %672
        %674 = vadd.xlane.f32.xlu0 %v660
        %v675 = vpop.xlane.xlu0 %674
        %676 = vadd.xlane.f32.xlu0 %v665
        %v677 = vpop.xlane.xlu0 %676
        %v678 = vmul.f32 %v671, 0.03125
        %v679 = vmul.f32 %v673, 0.03125
        %v680 = vmul.f32 %v675, 0.03125
        %v681 = vmul.f32 %v677, 0.03125
        %v682 = vmul.f32 %v650, %v650
        %v683 = vmul.f32 %v655, %v655
        %v684 = vmul.f32 %v660, %v660
        %v685 = vmul.f32 %v665, %v665
        %686 = vadd.xlane.f32.xlu0 %v682
        %v687 = vpop.xlane.xlu0 %686
        %688 = vadd.xlane.f32.xlu0 %v683
        %v689 = vpop.xlane.xlu0 %688
        %690 = vadd.xlane.f32.xlu0 %v684
        %v691 = vpop.xlane.xlu0 %690
        %692 = vadd.xlane.f32.xlu0 %v685
        %v693 = vpop.xlane.xlu0 %692
        %v694 = vmul.f32 %v687, 0.03125
        %v695 = vmul.f32 %v689, 0.03125
        %v696 = vmul.f32 %v691, 0.03125
        %v697 = vmul.f32 %v693, 0.03125
        %v698 = vmul.f32 %v678, %v678
        %v699 = vmul.f32 %v679, %v679
        %v700 = vmul.f32 %v680, %v680
        %v701 = vmul.f32 %v681, %v681
        %v702 = vsub.f32 %v694, %v698
        %v703 = vsub.f32 %v695, %v699
        %v704 = vsub.f32 %v696, %v700
        %v705 = vsub.f32 %v697, %v701
        %v706 = vmax.f32 %v702, 0.0
        %v707 = vmax.f32 %v703, 0.0
        %v708 = vmax.f32 %v704, 0.0
        %v709 = vmax.f32 %v705, 0.0
        %v710 = vsub.f32 %v650, %v678
        %v711 = vsub.f32 %v655, %v679
        %v712 = vsub.f32 %v660, %v680
        %v713 = vsub.f32 %v665, %v681
        %v714 = vadd.f32 %v706, 1e-05
        %v715 = vadd.f32 %v707, 1e-05
        %v716 = vadd.f32 %v708, 1e-05
        %v717 = vadd.f32 %v709, 1e-05
        %v718 = vrsqrt.pop %v714
        %v719 = vrsqrt.pop %v715
        %v720 = vrsqrt.pop %v716
        %v721 = vrsqrt.pop %v717
        %v722 = vmul.f32 %v710, %v718
        %v723 = vmul.f32 %v711, %v719
        %v724 = vmul.f32 %v712, %v720
        %v725 = vmul.f32 %v713, %v721
        %v727 = vlaneseq
        %v728 = vshrl.u32 %v727, 7
        %v729 = vsub.s32 0, %v728
        %v730 = vrot.slane %v668, %v729
        %v732 = vmul.f32 %v722, %v730
        %v733 = vmul.f32 %v723, %v730
        %v734 = vmul.f32 %v724, %v730
        %v735 = vmul.f32 %v725, %v730
        %v737 = vlaneseq
        %v738 = vshrl.u32 %v737, 7
        %v739 = vsub.s32 0, %v738
        %v740 = vrot.slane %v669, %v739
        %v742 = vadd.f32 %v732, %v740
        %v743 = vadd.f32 %v733, %v740
        %v744 = vadd.f32 %v734, %v740
        %v745 = vadd.f32 %v735, %v740
        %v746 = vmul.f32 %v742, 0.5
        %v747 = vmul.f32 %v743, 0.5
        %v748 = vmul.f32 %v744, 0.5
        %v749 = vmul.f32 %v745, 0.5
        %v750 = vmul.f32 %v742, 0.70710677
        %v751 = vmul.f32 %v743, 0.70710677
        %v752 = vmul.f32 %v744, 0.70710677
        %v753 = vmul.f32 %v745, 0.70710677
        %v754 = verf.f32.pop %v750
        %v755 = verf.f32.pop %v751
        %v756 = verf.f32.pop %v752
        %v757 = verf.f32.pop %v753
        %v758 = vadd.f32 %v754, 1.0
        %v759 = vadd.f32 %v755, 1.0
        %v760 = vadd.f32 %v756, 1.0
        %v761 = vadd.f32 %v757, 1.0
        %v762 = vmul.f32 %v746, %v758
        %v763 = vmul.f32 %v747, %v759
        %v764 = vmul.f32 %v748, %v760
        %v765 = vmul.f32 %v749, %v761
        %766 = vst [vmem:[%s349] sm:$0xff] %v762
        %767 = vst [vmem:[%s349 + $0x8] sm:$0xff] %v763
        %768 = vst [vmem:[%s349 + $0x10] sm:$0xff] %v764
        %769 = vst [vmem:[%s349 + $0x18] sm:$0xff] %v765
        %s770 = smul.u32 4, %s21
        %p771 = scmp.lt.s32.totalorder %s770, 7
        %s772 = scalar_select %p771, %s770, 7
        %s773 = smul.addr %s772, 8
        %s774 = scalar_lea.vmem %s9, %s773
        // Predicated region
        $region61: #{_impl.1} parent=55 // pred_check
          %p775 = pneg %p233
        $region62: #{_impl.1} parent=55 // pred_check_branch
          %777 = sbr.rel (%p775) target = $region64
        $region63: #{_impl.1} parent=55 // pred_region
          %s778 = smul.u32 4, %s21
        $region64: #{_impl.1} parent=55 // pred_fallthru
          _
      $region56: #{_impl.1} parent=5 // pred_fallthru
        _
      %p779 = scmp.le.s32.totalorder 2, %s16
      // Predicated region
      $region65: #{_impl.1} parent=5 // pred_check
        %p780 = pneg %p779
      $region66: #{_impl.1} parent=5 // pred_check_branch
        %782 = sbr.rel (%p780) target = $region68
      $region67: #{_impl.1} parent=5 // pred_region
        %s783 = ssub.s32 %s16, 2
        // Predicated region
        $region69: #{_impl.1} parent=67 // pred_check
          %p784 = pneg %p239
        $region70: #{_impl.1} parent=67 // pred_check_branch
          %786 = sbr.rel (%p784) target = $region72
        $region71: #{_impl.1} parent=67 // pred_region
          %s787 = smul.u32 4, %s22
          %p788 = scmp.lt.s32.totalorder %s787, 7
          %s789 = scalar_select %p788, %s787, 7
          %s790 = smul.addr %s789, 8
          %s791 = scalar_lea.vmem %s9, %s790
        $region72: #{_impl.1} parent=67 // pred_fallthru
          _
      $region68: #{_impl.1} parent=5 // pred_fallthru
        _
    $region6: #{_impl.1} parent=1 // loop_footer
      %s20 = sadd.s32 1, %s16
    $region7: #{_impl.1} parent=1 // loop_footer_branch
      %15 = sbr.rel target = $region3
    $region8: #{_impl.1} parent=1 // loop_exit
      _
    %792 = vsyncpa [#allocation3], 1
    %s793 = scalar_lea.sflag [#allocation3], 1
    %794 = vsyncpa %s793, 1

// kernel: _impl.1
$region0: #{_impl.1}
  #allocation0 [shape = 'u32[]', space=smem, size = 0x4, offset = 0x4, fixed_abs, tag = 'smem constant byte address 0x4 - core index']
  #allocation1 [shape = 'u32[144,128]{1,0:T(1,128)}', space=vmem, size = 0x12000, scoped, tag = 'internal scratch']
  %s0 = inlined_call_operand.vmem [shape: f32[64,16], index: 0, kind: input, shape index: {}]
  %s1 = inlined_call_operand.vmem [shape: f32[16,128], index: 1, kind: input, shape index: {}]
  %s2 = inlined_call_operand.vmem [shape: f32[1,128], index: 2, kind: input, shape index: {}]
  %s3 = inlined_call_operand.vmem [shape: f32[1,128], index: 3, kind: input, shape index: {}]
  %s4 = inlined_call_operand.vmem [shape: f32[1,128], index: 4, kind: input, shape index: {}]
  %s5 = inlined_call_operand.hbm [shape: f32[128,128], index: 5, kind: input, shape index: {}]
  %s6 = inlined_call_operand.vmem [shape: f32[1,128], index: 6, kind: input, shape index: {}]
  %s7 = inlined_call_operand.vmem [shape: f32[1,128], index: 7, kind: input, shape index: {}]
  %s8 = inlined_call_operand.vmem [shape: f32[1,128], index: 8, kind: input, shape index: {}]
  %s9 = inlined_call_operand.vmem [shape: f32[64,128], index: 9, kind: output, shape index: {}]
  %s10 = sld [smem:[#allocation0]]
  $region73: #{_impl.1} parent=0
    _
  %s12 = ssub.s32 1, %s10
  %s13 = scalar_select 0, %s12, %s10
  $region1: #{_impl.1} parent=0
    #allocation2 [shape = 'u8[65536]{0}', space=vmem, size = 0x10000, scoped, tag = 'input window, operand 5, single buffered']
    #allocation3 [shape = 's32[2]{0}', space=sflag, size = 0x8, scoped, tag = 'scoped memory for _impl.1']
    %14 = vsyncpa [#allocation3], 0
    loop: start=0, step=1, limit=4
    $region2: #{_impl.1} parent=1 // loop_pre_header
      _
    $region3: #{_impl.1} parent=1 // loop_header
      %s16 = sphi 0, %s20
      %p17 = scmp.ge.s32.totalorder %s16, 4
      %s26 = sphi 0, %s28
      %s29 = sphi 0, %s26
      %s30 = sphi 0, %s29
      %s46 = sphi 0, %s30
      %s50 = sphi 0, %s50
      %s52 = sphi 0, %s50
      %s53 = sphi 0, %s52
      %s67 = sphi 0, %s53
      %s71 = sphi 0, %s71
      %s73 = sphi 0, %s71
      %s74 = sphi 0, %s73
      %s88 = sphi 0, %s74
      %s92 = sphi 0, %s92
      %s94 = sphi 0, %s92
      %s95 = sphi 0, %s94
      %s109 = sphi 0, %s95
      %s113 = sphi 0, %s113
      %s115 = sphi 0, %s113
      %s116 = sphi 0, %s115
      %s130 = sphi 0, %s116
      %s134 = sphi 0, %s134
      %s136 = sphi 0, %s134
      %s137 = sphi 0, %s136
      %s151 = sphi 0, %s137
      %s155 = sphi 0, %s155
      %s157 = sphi 0, %s155
      %s158 = sphi 0, %s157
      %s172 = sphi 0, %s158
      %s176 = sphi 0, %s176
      %s178 = sphi 0, %s176
      %s179 = sphi 0, %s178
      %s193 = sphi 0, %s179
      %s197 = sphi 0, %s197
      %s199 = sphi 0, %s197
      %s200 = sphi 0, %s199
      %s214 = sphi 0, %s200
      %s220 = sphi 0, %s222
      %s223 = sphi 0, %s220
      %s224 = sphi 0, %s223
      %s240 = sphi 0, %s224
    $region4: #{_impl.1} parent=1 // loop_header_branch
      %19 = sbr.rel (%p17) target = $region8
    $region5: #{_impl.1} parent=1 // loop_body
      %s21 = ssub.s32 %s16, 1
      %s22 = ssub.s32 %s16, 2
      %s23 = sadd.s32 %s16, 1
      %s24 = ssub.s32 %s16, %s23
      %p25 = scmp.eq.s32.totalorder %s24, 0
      %s27 = sadd.s32 %s26, 1
      %s28 = scalar_select %p25, %s26, %s27
      %p31 = pneg %p25
      %p32 = scmp.eq.s32.totalorder %s16, 1
      %p33 = por %p31, %p32
      %p34 = scmp.ne.s32.totalorder %s26, %s29
      %p35 = scmp.eq.s32.totalorder %s16, 0
      %p36 = por %p34, %p35
      %p37 = scmp.ne.s32.totalorder %s26, %s29
      %p38 = scmp.eq.s32.totalorder %s21, 1
      %p39 = por %p37, %p38
      %p40 = scmp.ne.s32.totalorder %s29, %s30
      %p41 = scmp.eq.s32.totalorder %s21, 0
      %p42 = por %p40, %p41
      %p43 = scmp.ne.s32.totalorder %s29, %s30
      %p44 = scmp.eq.s32.totalorder %s22, 1
      %p45 = por %p43, %p44
      %p47 = scmp.ne.s32.totalorder %s30, %s46
      %p48 = scmp.eq.s32.totalorder %s22, 0
      %p49 = por %p47, %p48
      %s51 = sadd.s32 %s50, 1
      %p54 = scmp.eq.s32.totalorder %s16, 1
      %p55 = scmp.ne.s32.totalorder %s50, %s52
      %p56 = scmp.eq.s32.totalorder %s16, 0
      %p57 = por %p55, %p56
      %p58 = scmp.ne.s32.totalorder %s50, %s52
      %p59 = scmp.eq.s32.totalorder %s21, 1
      %p60 = por %p58, %p59
      %p61 = scmp.ne.s32.totalorder %s52, %s53
      %p62 = scmp.eq.s32.totalorder %s21, 0
      %p63 = por %p61, %p62
      %p64 = scmp.ne.s32.totalorder %s52, %s53
      %p65 = scmp.eq.s32.totalorder %s22, 1
      %p66 = por %p64, %p65
      %p68 = scmp.ne.s32.totalorder %s53, %s67
      %p69 = scmp.eq.s32.totalorder %s22, 0
      %p70 = por %p68, %p69
      %s72 = sadd.s32 %s71, 1
      %p75 = scmp.eq.s32.totalorder %s16, 1
      %p76 = scmp.ne.s32.totalorder %s71, %s73
      %p77 = scmp.eq.s32.totalorder %s16, 0
      %p78 = por %p76, %p77
      %p79 = scmp.ne.s32.totalorder %s71, %s73
      %p80 = scmp.eq.s32.totalorder %s21, 1
      %p81 = por %p79, %p80
      %p82 = scmp.ne.s32.totalorder %s73, %s74
      %p83 = scmp.eq.s32.totalorder %s21, 0
      %p84 = por %p82, %p83
      %p85 = scmp.ne.s32.totalorder %s73, %s74
      %p86 = scmp.eq.s32.totalorder %s22, 1
      %p87 = por %p85, %p86
      %p89 = scmp.ne.s32.totalorder %s74, %s88
      %p90 = scmp.eq.s32.totalorder %s22, 0
      %p91 = por %p89, %p90
      %s93 = sadd.s32 %s92, 1
      %p96 = scmp.eq.s32.totalorder %s16, 1
      %p97 = scmp.ne.s32.totalorder %s92, %s94
      %p98 = scmp.eq.s32.totalorder %s16, 0
      %p99 = por %p97, %p98
      %p100 = scmp.ne.s32.totalorder %s92, %s94
      %p101 = scmp.eq.s32.totalorder %s21, 1
      %p102 = por %p100, %p101
      %p103 = scmp.ne.s32.totalorder %s94, %s95
      %p104 = scmp.eq.s32.totalorder %s21, 0
      %p105 = por %p103, %p104
      %p106 = scmp.ne.s32.totalorder %s94, %s95
      %p107 = scmp.eq.s32.totalorder %s22, 1
      %p108 = por %p106, %p107
      %p110 = scmp.ne.s32.totalorder %s95, %s109
      %p111 = scmp.eq.s32.totalorder %s22, 0
      %p112 = por %p110, %p111
      %s114 = sadd.s32 %s113, 1
      %p117 = scmp.eq.s32.totalorder %s16, 1
      %p118 = scmp.ne.s32.totalorder %s113, %s115
      %p119 = scmp.eq.s32.totalorder %s16, 0
      %p120 = por %p118, %p119
      %p121 = scmp.ne.s32.totalorder %s113, %s115
      %p122 = scmp.eq.s32.totalorder %s21, 1
      %p123 = por %p121, %p122
      %p124 = scmp.ne.s32.totalorder %s115, %s116
      %p125 = scmp.eq.s32.totalorder %s21, 0
      %p126 = por %p124, %p125
      %p127 = scmp.ne.s32.totalorder %s115, %s116
      %p128 = scmp.eq.s32.totalorder %s22, 1
      %p129 = por %p127, %p128
      %p131 = scmp.ne.s32.totalorder %s116, %s130
      %p132 = scmp.eq.s32.totalorder %s22, 0
      %p133 = por %p131, %p132
      %s135 = sadd.s32 %s134, 1
      %p138 = scmp.eq.s32.totalorder %s16, 1
      %p139 = scmp.ne.s32.totalorder %s134, %s136
      %p140 = scmp.eq.s32.totalorder %s16, 0
      %p141 = por %p139, %p140
      %p142 = scmp.ne.s32.totalorder %s134, %s136
      %p143 = scmp.eq.s32.totalorder %s21, 1
      %p144 = por %p142, %p143
      %p145 = scmp.ne.s32.totalorder %s136, %s137
      %p146 = scmp.eq.s32.totalorder %s21, 0
      %p147 = por %p145, %p146
      %p148 = scmp.ne.s32.totalorder %s136, %s137
      %p149 = scmp.eq.s32.totalorder %s22, 1
      %p150 = por %p148, %p149
      %p152 = scmp.ne.s32.totalorder %s137, %s151
      %p153 = scmp.eq.s32.totalorder %s22, 0
      %p154 = por %p152, %p153
      %s156 = sadd.s32 %s155, 1
      %p159 = scmp.eq.s32.totalorder %s16, 1
      %p160 = scmp.ne.s32.totalorder %s155, %s157
      %p161 = scmp.eq.s32.totalorder %s16, 0
      %p162 = por %p160, %p161
      %p163 = scmp.ne.s32.totalorder %s155, %s157
      %p164 = scmp.eq.s32.totalorder %s21, 1
      %p165 = por %p163, %p164
      %p166 = scmp.ne.s32.totalorder %s157, %s158
      %p167 = scmp.eq.s32.totalorder %s21, 0
      %p168 = por %p166, %p167
      %p169 = scmp.ne.s32.totalorder %s157, %s158
      %p170 = scmp.eq.s32.totalorder %s22, 1
      %p171 = por %p169, %p170
      %p173 = scmp.ne.s32.totalorder %s158, %s172
      %p174 = scmp.eq.s32.totalorder %s22, 0
      %p175 = por %p173, %p174
      %s177 = sadd.s32 %s176, 1
      %p180 = scmp.eq.s32.totalorder %s16, 1
      %p181 = scmp.ne.s32.totalorder %s176, %s178
      %p182 = scmp.eq.s32.totalorder %s16, 0
      %p183 = por %p181, %p182
      %p184 = scmp.ne.s32.totalorder %s176, %s178
      %p185 = scmp.eq.s32.totalorder %s21, 1
      %p186 = por %p184, %p185
      %p187 = scmp.ne.s32.totalorder %s178, %s179
      %p188 = scmp.eq.s32.totalorder %s21, 0
      %p189 = por %p187, %p188
      %p190 = scmp.ne.s32.totalorder %s178, %s179
      %p191 = scmp.eq.s32.totalorder %s22, 1
      %p192 = por %p190, %p191
      %p194 = scmp.ne.s32.totalorder %s179, %s193
      %p195 = scmp.eq.s32.totalorder %s22, 0
      %p196 = por %p194, %p195
      %s198 = sadd.s32 %s197, 1
      %p201 = scmp.eq.s32.totalorder %s16, 1
      %p202 = scmp.ne.s32.totalorder %s197, %s199
      %p203 = scmp.eq.s32.totalorder %s16, 0
      %p204 = por %p202, %p203
      %p205 = scmp.ne.s32.totalorder %s197, %s199
      %p206 = scmp.eq.s32.totalorder %s21, 1
      %p207 = por %p205, %p206
      %p208 = scmp.ne.s32.totalorder %s199, %s200
      %p209 = scmp.eq.s32.totalorder %s21, 0
      %p210 = por %p208, %p209
      %p211 = scmp.ne.s32.totalorder %s199, %s200
      %p212 = scmp.eq.s32.totalorder %s22, 1
      %p213 = por %p211, %p212
      %p215 = scmp.ne.s32.totalorder %s200, %s214
      %p216 = scmp.eq.s32.totalorder %s22, 0
      %p217 = por %p215, %p216
      %s218 = ssub.s32 %s16, %s23
      %p219 = scmp.eq.s32.totalorder %s218, 0
      %s221 = sadd.s32 %s220, 1
      %s222 = scalar_select %p219, %s220, %s221
      %p225 = pneg %p219
      %p226 = scmp.eq.s32.totalorder %s16, 1
      %p227 = por %p225, %p226
      %p228 = scmp.ne.s32.totalorder %s220, %s223
      %p229 = scmp.eq.s32.totalorder %s16, 0
      %p230 = por %p228, %p229
      %p231 = scmp.ne.s32.totalorder %s220, %s223
      %p232 = scmp.eq.s32.totalorder %s21, 1
      %p233 = por %p231, %p232
      %p234 = scmp.ne.s32.totalorder %s223, %s224
      %p235 = scmp.eq.s32.totalorder %s21, 0
      %p236 = por %p234, %p235
      %p237 = scmp.ne.s32.totalorder %s223, %s224
      %p238 = scmp.eq.s32.totalorder %s22, 1
      %p239 = por %p237, %p238
      %p241 = scmp.ne.s32.totalorder %s224, %s240
      %p242 = scmp.eq.s32.totalorder %s22, 0
      %p243 = por %p241, %p242
      %p244 = scmp.le.s32.totalorder 1, %s16
      %p245 = scmp.lt.s32.totalorder %s16, 3
      %p246 = pnand %p244, %p245
      %p247 = pneg %p246
      // Predicated region
      $region9: #{_impl.1} parent=5 // pred_check
        _
      $region10: #{_impl.1} parent=5 // pred_check_branch
        %249 = sbr.rel (%p246) target = $region12
      $region11: #{_impl.1} parent=5 // pred_region
        %s250 = ssub.s32 %s16, 1
        // Predicated region
        $region13: #{_impl.1} parent=11 // pred_check
          %p251 = pneg %p63
        $region14: #{_impl.1} parent=11 // pred_check_branch
          %253 = sbr.rel (%p251) target = $region16
        $region15: #{_impl.1} parent=11 // pred_region
          _
        $region16: #{_impl.1} parent=11 // pred_fallthru
          _
        // Predicated region
        $region17: #{_impl.1} parent=11 // pred_check
          %p254 = pneg %p84
        $region18: #{_impl.1} parent=11 // pred_check_branch
          %256 = sbr.rel (%p254) target = $region20
        $region19: #{_impl.1} parent=11 // pred_region
          _
        $region20: #{_impl.1} parent=11 // pred_fallthru
          _
        // Predicated region
        $region21: #{_impl.1} parent=11 // pred_check
          %p257 = pneg %p105
        $region22: #{_impl.1} parent=11 // pred_check_branch
          %259 = sbr.rel (%p257) target = $region24
        $region23: #{_impl.1} parent=11 // pred_region
          _
        $region24: #{_impl.1} parent=11 // pred_fallthru
          _
        // Predicated region
        $region25: #{_impl.1} parent=11 // pred_check
          %p260 = pneg %p126
        $region26: #{_impl.1} parent=11 // pred_check_branch
          %262 = sbr.rel (%p260) target = $region28
        $region27: #{_impl.1} parent=11 // pred_region
          _
        $region28: #{_impl.1} parent=11 // pred_fallthru
          _
        // Predicated region
        $region29: #{_impl.1} parent=11 // pred_check
          %p263 = pneg %p147
        $region30: #{_impl.1} parent=11 // pred_check_branch
          %265 = sbr.rel (%p263) target = $region32
        $region31: #{_impl.1} parent=11 // pred_region
          %s267 = ssub.s32 2048, 2048
          %268 = vsyncadd [#allocation3], %s267
          %s269 = sshll.u32 [#allocation2], 4
          %s270 = int_to_ptr.vmem [resolvable:$true] %s269
          %275 = dma.hbm_to_vmem [thread:$0]  %s5, 2048, %s270, [#allocation3], 128, 128, 8
        $region32: #{_impl.1} parent=11 // pred_fallthru
          _
        // Predicated region
        $region33: #{_impl.1} parent=11 // pred_check
          %p276 = pneg %p168
        $region34: #{_impl.1} parent=11 // pred_check_branch
          %278 = sbr.rel (%p276) target = $region36
        $region35: #{_impl.1} parent=11 // pred_region
          _
        $region36: #{_impl.1} parent=11 // pred_fallthru
          _
        // Predicated region
        $region37: #{_impl.1} parent=11 // pred_check
          %p279 = pneg %p189
        $region38: #{_impl.1} parent=11 // pred_check_branch
          %281 = sbr.rel (%p279) target = $region40
        $region39: #{_impl.1} parent=11 // pred_region
          _
        $region40: #{_impl.1} parent=11 // pred_fallthru
          _
        // Predicated region
        $region41: #{_impl.1} parent=11 // pred_check
          %p282 = pneg %p210
        $region42: #{_impl.1} parent=11 // pred_check_branch
          %284 = sbr.rel (%p282) target = $region44
        $region43: #{_impl.1} parent=11 // pred_region
          _
        $region44: #{_impl.1} parent=11 // pred_fallthru
          _
      $region12: #{_impl.1} parent=5 // pred_fallthru
        _
      %p285 = scmp.lt.s32.totalorder %s16, 2
      // Predicated region
      $region45: #{_impl.1} parent=5 // pred_check
        %p286 = pneg %p285
      $region46: #{_impl.1} parent=5 // pred_check_branch
        %288 = sbr.rel (%p286) target = $region48
      $region47: #{_impl.1} parent=5 // pred_region
        // Predicated region
        $region49: #{_impl.1} parent=47 // pred_check
          %p289 = pneg %p36
        $region50: #{_impl.1} parent=47 // pred_check_branch
          %291 = sbr.rel (%p289) target = $region52
        $region51: #{_impl.1} parent=47 // pred_region
          %s292 = smul.u32 4, %s16
          %p293 = scmp.lt.s32.totalorder %s292, 7
          %s294 = scalar_select %p293, %s292, 7
          %s295 = smul.addr %s294, 8
          %s296 = scalar_lea.vmem %s0, %s295
          %s297 = smul.u32 4, %s16
        $region52: #{_impl.1} parent=47 // pred_fallthru
          _
      $region48: #{_impl.1} parent=5 // pred_fallthru
        _
      %p298 = scmp.le.s32.totalorder 1, %s16
      %p299 = scmp.lt.s32.totalorder %s16, 3
      %p300 = pnand %p298, %p299
      %p301 = pneg %p300
      // Predicated region
      $region53: #{_impl.1} parent=5 // pred_check
        _
      $region54: #{_impl.1} parent=5 // pred_check_branch
        %303 = sbr.rel (%p300) target = $region56
      $region55: #{_impl.1} parent=5 // pred_region
        %s304 = ssub.s32 %s16, 1
        // Predicated region
        $region57: #{_impl.1} parent=55 // pred_check
          %p305 = pneg %p147
        $region58: #{_impl.1} parent=55 // pred_check_branch
          %307 = sbr.rel (%p305) target = $region60
        $region59: #{_impl.1} parent=55 // pred_region
          %308 = dma.done [#allocation3], 2048
        $region60: #{_impl.1} parent=55 // pred_fallthru
          _
        %s309 = smul.u32 4, %s21
        %p310 = scmp.lt.s32.totalorder %s309, 7
        %s311 = scalar_select %p310, %s309, 7
        %s312 = smul.addr %s311, 8
        %s313 = scalar_lea.vmem %s0, %s312
        %p314 = pneg %p42
        %p315 = pneg %p39
        %p316 = pneg %p63
        %p317 = pneg %p60
        %p318 = pneg %p84
        %p319 = pneg %p81
        %p320 = pneg %p105
        %p321 = pneg %p102
        %p322 = pneg %p126
        %p323 = pneg %p123
        %p324 = pneg %p147
        %p325 = pneg %p144
        %p326 = pneg %p168
        %p327 = pneg %p165
        %p328 = pneg %p189
        %p329 = pneg %p186
        %p330 = pneg %p210
        %p331 = pneg %p207
        %p332 = pneg %p236
        %p333 = pneg %p233
        %s334 = smul.u32 4, %s21
        %p335 = scmp.lt.s32.totalorder %s334, 7
        %s336 = scalar_select %p335, %s334, 7
        %s337 = smul.addr %s336, 8
        %s338 = scalar_lea.vmem %s9, %s337
        %s339 = smul.u32 4, %s21
        %p340 = scmp.lt.s32.totalorder %s339, 7
        %s341 = scalar_select %p340, %s339, 7
        %s342 = smul.addr %s341, 8
        %s343 = scalar_lea.vmem %s0, %s342
        %s344 = smul.u32 4, %s21
        %s345 = smul.u32 4, %s21
        %p346 = scmp.lt.s32.totalorder %s345, 7
        %s347 = scalar_select %p346, %s345, 7
        %s348 = smul.addr %s347, 8
        %s349 = scalar_lea.vmem %s9, %s348
        %s350 = smul.u32 4, %s21
        %v351 = vld [vmem:[%s1] sm:$0xff]
        %v352 = vld [vmem:[%s1 + $0x8] sm:$0xff]
        %v353 = vld [vmem:[%s343] sm:$0xff]
        %v354 = vld [vmem:[%s343 + $0x8] sm:$0xff]
        %v355 = vld [vmem:[%s343 + $0x10] sm:$0xff]
        %v356 = vld [vmem:[%s343 + $0x18] sm:$0xff]
        %v357 = vld [vmem:[%s2] sm:$0x1]
        %v359 = vlaneseq
        %v360 = vshrl.u32 %v359, 7
        %v361 = vsub.s32 0, %v360
        %v362 = vrot.slane %v357, %v361
        %vm364 = vcmask 130048
        %v366 = vsel %vm364, %v353, 0
        %v369 = vsel %vm364, %v354, 0
        %v372 = vsel %vm364, %v355, 0
        %v375 = vsel %vm364, %v356, 0
        %377 = vmatprep.subr.mxu0 0.0
        %378 = vmatpush1.msra.mxu0 %v351
        %379 = vmatprep.subr.mxu0 0.0
        %380 = vmatpush1.msra.mxu0 %v352
        %381 = vmatprep.subr.mxu0 0.0
        %382 = vmatpush1.msra.mxu0 0.0
        %383 = vmatprep.subr.mxu0 0.0
        %384 = vmatpush1.msra.mxu0 0.0
        %385 = vmatprep.subr.mxu0 0.0
        %386 = vmatpush1.msra.mxu0 0.0
        %387 = vmatprep.subr.mxu0 0.0
        %388 = vmatpush1.msra.mxu0 0.0
        %389 = vmatprep.subr.mxu0 0.0
        %390 = vmatpush1.msra.mxu0 0.0
        %391 = vmatprep.subr.mxu0 0.0
        %392 = vmatpush1.msra.mxu0 0.0
        %393 = vmatprep.subr.mxu0 0.0
        %394 = vmatpush1.msra.mxu0 0.0
        %395 = vmatprep.subr.mxu0 0.0
        %396 = vmatpush1.msra.mxu0 0.0
        %397 = vmatprep.subr.mxu0 0.0
        %398 = vmatpush1.msra.mxu0 0.0
        %399 = vmatprep.subr.mxu0 0.0
        %400 = vmatpush1.msra.mxu0 0.0
        %401 = vmatprep.subr.mxu0 0.0
        %402 = vmatpush1.msra.mxu0 0.0
        %403 = vmatprep.subr.mxu0 0.0
        %404 = vmatpush1.msra.mxu0 0.0
        %405 = vmatprep.subr.mxu0 0.0
        %406 = vmatpush1.msra.mxu0 0.0
        %407 = vmatprep.subr.mxu0 0.0
        %408 = vmatpush1.msra.mxu0 0.0
        %409 = vmatprep.subr.mxu0 0.0
        %410 = vmatpush1.msra.mxu0 0.0
        %411 = vmatprep.subr.mxu0 0.0
        %412 = vmatpush1.msra.mxu0 0.0
        %413 = vmatprep.subr.mxu0 0.0
        %414 = vmatpush1.msra.mxu0 0.0
        %415 = vmatprep.subr.mxu0 0.0
        %416 = vmatpush1.msra.mxu0 0.0
        %417 = vmatprep.subr.mxu0 0.0
        %418 = vmatpush1.msra.mxu0 0.0
        %419 = vmatprep.subr.mxu0 0.0
        %420 = vmatpush1.msra.mxu0 0.0
        %421 = vmatprep.subr.mxu0 0.0
        %422 = vmatpush1.msra.mxu0 0.0
        %423 = vmatprep.subr.mxu0 0.0
        %424 = vmatpush1.msra.mxu0 0.0
        %425 = vmatprep.subr.mxu0 0.0
        %426 = vmatpush1.msra.mxu0 0.0
        %427 = vmatprep.subr.mxu0 0.0
        %428 = vmatpush1.msra.mxu0 0.0
        %429 = vmatprep.subr.mxu0 0.0
        %430 = vmatpush1.msra.mxu0 0.0
        %431 = vmatprep.subr.mxu0 0.0
        %432 = vmatpush1.msra.mxu0 0.0
        %433 = vmatprep.subr.mxu0 0.0
        %434 = vmatpush1.msra.mxu0 0.0
        %435 = vmatprep.subr.mxu0 0.0
        %436 = vmatpush1.msra.mxu0 0.0
        %437 = vmatprep.subr.mxu0 0.0
        %438 = vmatpush1.msra.mxu0 0.0
        %439 = vmatprep.subr.mxu0 0.0
        %440 = vmatpush1.msra.mxu0 0.0
        %441 = vmatprep.mubr.f32.mxu0 0.0
        %442 = vmatmul.mubr.f32.gmra.mrb[0].mxu0 %v366
        %v443 = vpop.f32.mrb[0].mxu0
        %v444 = vadd.f32 %v362, %v443
        %v445 = vpop.f32.mrb[0].mxu0
        %446 = vmatprep.mubr.f32.mxu0 0.0
        %447 = vmatmul.mubr.f32.gmra.mrb[0].mxu0 %v369
        %v448 = vpop.f32.mrb[0].mxu0
        %v449 = vadd.f32 %v362, %v448
        %v450 = vpop.f32.mrb[0].mxu0
        %451 = vmatprep.mubr.f32.mxu0 0.0
        %452 = vmatmul.mubr.f32.gmra.mrb[0].mxu0 %v372
        %v453 = vpop.f32.mrb[0].mxu0
        %v454 = vadd.f32 %v362, %v453
        %v455 = vpop.f32.mrb[0].mxu0
        %456 = vmatprep.mubr.f32.mxu0 0.0
        %457 = vmatmul.mubr.f32.gmra.mrb[0].mxu0 %v375
        %v458 = vpop.f32.mrb[0].mxu0
        %v459 = vadd.f32 %v362, %v458
        %v460 = vpop.f32.mrb[0].mxu0
        %461 = vdwg.mxu0
        %v462 = vld [vmem:[%s3] sm:$0x1]
        %v463 = vld [vmem:[%s4] sm:$0x1]
        %464 = vadd.xlane.f32.xlu0 %v444
        %v465 = vpop.xlane.xlu0 %464
        %466 = vadd.xlane.f32.xlu0 %v449
        %v467 = vpop.xlane.xlu0 %466
        %468 = vadd.xlane.f32.xlu0 %v454
        %v469 = vpop.xlane.xlu0 %468
        %470 = vadd.xlane.f32.xlu0 %v459
        %v471 = vpop.xlane.xlu0 %470
        %v472 = vmul.f32 %v465, 0.03125
        %v473 = vmul.f32 %v467, 0.03125
        %v474 = vmul.f32 %v469, 0.03125
        %v475 = vmul.f32 %v471, 0.03125
        %v476 = vmul.f32 %v444, %v444
        %v477 = vmul.f32 %v449, %v449
        %v478 = vmul.f32 %v454, %v454
        %v479 = vmul.f32 %v459, %v459
        %480 = vadd.xlane.f32.xlu0 %v476
        %v481 = vpop.xlane.xlu0 %480
        %482 = vadd.xlane.f32.xlu0 %v477
        %v483 = vpop.xlane.xlu0 %482
        %484 = vadd.xlane.f32.xlu0 %v478
        %v485 = vpop.xlane.xlu0 %484
        %486 = vadd.xlane.f32.xlu0 %v479
        %v487 = vpop.xlane.xlu0 %486
        %v488 = vmul.f32 %v481, 0.03125
        %v489 = vmul.f32 %v483, 0.03125
        %v490 = vmul.f32 %v485, 0.03125
        %v491 = vmul.f32 %v487, 0.03125
        %v492 = vmul.f32 %v472, %v472
        %v493 = vmul.f32 %v473, %v473
        %v494 = vmul.f32 %v474, %v474
        %v495 = vmul.f32 %v475, %v475
        %v496 = vsub.f32 %v488, %v492
        %v497 = vsub.f32 %v489, %v493
        %v498 = vsub.f32 %v490, %v494
        %v499 = vsub.f32 %v491, %v495
        %v500 = vmax.f32 %v496, 0.0
        %v501 = vmax.f32 %v497, 0.0
        %v502 = vmax.f32 %v498, 0.0
        %v503 = vmax.f32 %v499, 0.0
        %v504 = vsub.f32 %v444, %v472
        %v505 = vsub.f32 %v449, %v473
        %v506 = vsub.f32 %v454, %v474
        %v507 = vsub.f32 %v459, %v475
        %v508 = vadd.f32 %v500, 1e-05
        %v509 = vadd.f32 %v501, 1e-05
        %v510 = vadd.f32 %v502, 1e-05
        %v511 = vadd.f32 %v503, 1e-05
        %v512 = vrsqrt.pop %v508
        %v513 = vrsqrt.pop %v509
        %v514 = vrsqrt.pop %v510
        %v515 = vrsqrt.pop %v511
        %v516 = vmul.f32 %v504, %v512
        %v517 = vmul.f32 %v505, %v513
        %v518 = vmul.f32 %v506, %v514
        %v519 = vmul.f32 %v507, %v515
        %v521 = vlaneseq
        %v522 = vshrl.u32 %v521, 7
        %v523 = vsub.s32 0, %v522
        %v524 = vrot.slane %v462, %v523
        %v526 = vmul.f32 %v516, %v524
        %v527 = vmul.f32 %v517, %v524
        %v528 = vmul.f32 %v518, %v524
        %v529 = vmul.f32 %v519, %v524
        %v531 = vlaneseq
        %v532 = vshrl.u32 %v531, 7
        %v533 = vsub.s32 0, %v532
        %v534 = vrot.slane %v463, %v533
        %v536 = vadd.f32 %v526, %v534
        %v537 = vadd.f32 %v527, %v534
        %v538 = vadd.f32 %v528, %v534
        %v539 = vadd.f32 %v529, %v534
        %v540 = vmul.f32 %v536, 0.5
        %v541 = vmul.f32 %v537, 0.5
        %v542 = vmul.f32 %v538, 0.5
        %v543 = vmul.f32 %v539, 0.5
        %v544 = vmul.f32 %v536, 0.70710677
        %v545 = vmul.f32 %v537, 0.70710677
        %v546 = vmul.f32 %v538, 0.70710677
        %v547 = vmul.f32 %v539, 0.70710677
        %v548 = verf.f32.pop %v544
        %v549 = verf.f32.pop %v545
        %v550 = verf.f32.pop %v546
        %v551 = verf.f32.pop %v547
        %v552 = vadd.f32 %v548, 1.0
        %v553 = vadd.f32 %v549, 1.0
        %v554 = vadd.f32 %v550, 1.0
        %v555 = vadd.f32 %v551, 1.0
        %v556 = vmul.f32 %v540, %v552
        %v557 = vmul.f32 %v541, %v553
        %v558 = vmul.f32 %v542, %v554
        %v559 = vmul.f32 %v543, %v555
        %v560 = vld [vmem:[#allocation2] sm:$0xff]
        %v561 = vld [vmem:[#allocation2 + $0x8] sm:$0xff]
        %v562 = vld [vmem:[#allocation2 + $0x10] sm:$0xff]
        %v563 = vld [vmem:[#allocation2 + $0x18] sm:$0xff]
        %v564 = vld [vmem:[#allocation2 + $0x20] sm:$0xff]
        %v565 = vld [vmem:[#allocation2 + $0x28] sm:$0xff]
        %v566 = vld [vmem:[#allocation2 + $0x30] sm:$0xff]
        %v567 = vld [vmem:[#allocation2 + $0x38] sm:$0xff]
        %v568 = vld [vmem:[#allocation2 + $0x40] sm:$0xff]
        %v569 = vld [vmem:[#allocation2 + $0x48] sm:$0xff]
        %v570 = vld [vmem:[#allocation2 + $0x50] sm:$0xff]
        %v571 = vld [vmem:[#allocation2 + $0x58] sm:$0xff]
        %v572 = vld [vmem:[#allocation2 + $0x60] sm:$0xff]
        %v573 = vld [vmem:[#allocation2 + $0x68] sm:$0xff]
        %v574 = vld [vmem:[#allocation2 + $0x70] sm:$0xff]
        %v575 = vld [vmem:[#allocation2 + $0x78] sm:$0xff]
        %v576 = vld [vmem:[%s6] sm:$0x1]
        %v578 = vlaneseq
        %v579 = vshrl.u32 %v578, 7
        %v580 = vsub.s32 0, %v579
        %v581 = vrot.slane %v576, %v580
        %583 = vmatprep.subr.mxu0 0.0
        %584 = vmatpush1.msra.mxu0 %v560
        %585 = vmatprep.subr.mxu0 0.0
        %586 = vmatpush1.msra.mxu0 %v561
        %587 = vmatprep.subr.mxu0 0.0
        %588 = vmatpush1.msra.mxu0 %v562
        %589 = vmatprep.subr.mxu0 0.0
        %590 = vmatpush1.msra.mxu0 %v563
        %591 = vmatprep.subr.mxu0 0.0
        %592 = vmatpush1.msra.mxu0 %v564
        %593 = vmatprep.subr.mxu0 0.0
        %594 = vmatpush1.msra.mxu0 %v565
        %595 = vmatprep.subr.mxu0 0.0
        %596 = vmatpush1.msra.mxu0 %v566
        %597 = vmatprep.subr.mxu0 0.0
        %598 = vmatpush1.msra.mxu0 %v567
        %599 = vmatprep.subr.mxu0 0.0
        %600 = vmatpush1.msra.mxu0 %v568
        %601 = vmatprep.subr.mxu0 0.0
        %602 = vmatpush1.msra.mxu0 %v569
        %603 = vmatprep.subr.mxu0 0.0
        %604 = vmatpush1.msra.mxu0 %v570
        %605 = vmatprep.subr.mxu0 0.0
        %606 = vmatpush1.msra.mxu0 %v571
        %607 = vmatprep.subr.mxu0 0.0
        %608 = vmatpush1.msra.mxu0 %v572
        %609 = vmatprep.subr.mxu0 0.0
        %610 = vmatpush1.msra.mxu0 %v573
        %611 = vmatprep.subr.mxu0 0.0
        %612 = vmatpush1.msra.mxu0 %v574
        %613 = vmatprep.subr.mxu0 0.0
        %614 = vmatpush1.msra.mxu0 %v575
        %615 = vmatprep.subr.mxu0 0.0
        %616 = vmatpush1.msra.mxu0 0.0
        %617 = vmatprep.subr.mxu0 0.0
        %618 = vmatpush1.msra.mxu0 0.0
        %619 = vmatprep.subr.mxu0 0.0
        %620 = vmatpush1.msra.mxu0 0.0
        %621 = vmatprep.subr.mxu0 0.0
        %622 = vmatpush1.msra.mxu0 0.0
        %623 = vmatprep.subr.mxu0 0.0
        %624 = vmatpush1.msra.mxu0 0.0
        %625 = vmatprep.subr.mxu0 0.0
        %626 = vmatpush1.msra.mxu0 0.0
        %627 = vmatprep.subr.mxu0 0.0
        %628 = vmatpush1.msra.mxu0 0.0
        %629 = vmatprep.subr.mxu0 0.0
        %630 = vmatpush1.msra.mxu0 0.0
        %631 = vmatprep.subr.mxu0 0.0
        %632 = vmatpush1.msra.mxu0 0.0
        %633 = vmatprep.subr.mxu0 0.0
        %634 = vmatpush1.msra.mxu0 0.0
        %635 = vmatprep.subr.mxu0 0.0
        %636 = vmatpush1.msra.mxu0 0.0
        %637 = vmatprep.subr.mxu0 0.0
        %638 = vmatpush1.msra.mxu0 0.0
        %639 = vmatprep.subr.mxu0 0.0
        %640 = vmatpush1.msra.mxu0 0.0
        %641 = vmatprep.subr.mxu0 0.0
        %642 = vmatpush1.msra.mxu0 0.0
        %643 = vmatprep.subr.mxu0 0.0
        %644 = vmatpush1.msra.mxu0 0.0
        %645 = vmatprep.subr.mxu0 0.0
        %646 = vmatpush1.msra.mxu0 0.0
        %647 = vmatprep.mubr.f32.mxu0 0.0
        %648 = vmatmul.mubr.f32.gmra.mrb[0].mxu0 %v556
        %v649 = vpop.f32.mrb[0].mxu0
        %v650 = vadd.f32 %v581, %v649
        %v651 = vpop.f32.mrb[0].mxu0
        %652 = vmatprep.mubr.f32.mxu0 0.0
        %653 = vmatmul.mubr.f32.gmra.mrb[0].mxu0 %v557
        %v654 = vpop.f32.mrb[0].mxu0
        %v655 = vadd.f32 %v581, %v654
        %v656 = vpop.f32.mrb[0].mxu0
        %657 = vmatprep.mubr.f32.mxu0 0.0
        %658 = vmatmul.mubr.f32.gmra.mrb[0].mxu0 %v558
        %v659 = vpop.f32.mrb[0].mxu0
        %v660 = vadd.f32 %v581, %v659
        %v661 = vpop.f32.mrb[0].mxu0
        %662 = vmatprep.mubr.f32.mxu0 0.0
        %663 = vmatmul.mubr.f32.gmra.mrb[0].mxu0 %v559
        %v664 = vpop.f32.mrb[0].mxu0
        %v665 = vadd.f32 %v581, %v664
        %v666 = vpop.f32.mrb[0].mxu0
        %667 = vdwg.mxu0
        %v668 = vld [vmem:[%s7] sm:$0x1]
        %v669 = vld [vmem:[%s8] sm:$0x1]
        %670 = vadd.xlane.f32.xlu0 %v650
        %v671 = vpop.xlane.xlu0 %670
        %672 = vadd.xlane.f32.xlu0 %v655
        %v673 = vpop.xlane.xlu0 %672
        %674 = vadd.xlane.f32.xlu0 %v660
        %v675 = vpop.xlane.xlu0 %674
        %676 = vadd.xlane.f32.xlu0 %v665
        %v677 = vpop.xlane.xlu0 %676
        %v678 = vmul.f32 %v671, 0.03125
        %v679 = vmul.f32 %v673, 0.03125
        %v680 = vmul.f32 %v675, 0.03125
        %v681 = vmul.f32 %v677, 0.03125
        %v682 = vmul.f32 %v650, %v650
        %v683 = vmul.f32 %v655, %v655
        %v684 = vmul.f32 %v660, %v660
        %v685 = vmul.f32 %v665, %v665
        %686 = vadd.xlane.f32.xlu0 %v682
        %v687 = vpop.xlane.xlu0 %686
        %688 = vadd.xlane.f32.xlu0 %v683
        %v689 = vpop.xlane.xlu0 %688
        %690 = vadd.xlane.f32.xlu0 %v684
        %v691 = vpop.xlane.xlu0 %690
        %692 = vadd.xlane.f32.xlu0 %v685
        %v693 = vpop.xlane.xlu0 %692
        %v694 = vmul.f32 %v687, 0.03125
        %v695 = vmul.f32 %v689, 0.03125
        %v696 = vmul.f32 %v691, 0.03125
        %v697 = vmul.f32 %v693, 0.03125
        %v698 = vmul.f32 %v678, %v678
        %v699 = vmul.f32 %v679, %v679
        %v700 = vmul.f32 %v680, %v680
        %v701 = vmul.f32 %v681, %v681
        %v702 = vsub.f32 %v694, %v698
        %v703 = vsub.f32 %v695, %v699
        %v704 = vsub.f32 %v696, %v700
        %v705 = vsub.f32 %v697, %v701
        %v706 = vmax.f32 %v702, 0.0
        %v707 = vmax.f32 %v703, 0.0
        %v708 = vmax.f32 %v704, 0.0
        %v709 = vmax.f32 %v705, 0.0
        %v710 = vsub.f32 %v650, %v678
        %v711 = vsub.f32 %v655, %v679
        %v712 = vsub.f32 %v660, %v680
        %v713 = vsub.f32 %v665, %v681
        %v714 = vadd.f32 %v706, 1e-05
        %v715 = vadd.f32 %v707, 1e-05
        %v716 = vadd.f32 %v708, 1e-05
        %v717 = vadd.f32 %v709, 1e-05
        %v718 = vrsqrt.pop %v714
        %v719 = vrsqrt.pop %v715
        %v720 = vrsqrt.pop %v716
        %v721 = vrsqrt.pop %v717
        %v722 = vmul.f32 %v710, %v718
        %v723 = vmul.f32 %v711, %v719
        %v724 = vmul.f32 %v712, %v720
        %v725 = vmul.f32 %v713, %v721
        %v727 = vlaneseq
        %v728 = vshrl.u32 %v727, 7
        %v729 = vsub.s32 0, %v728
        %v730 = vrot.slane %v668, %v729
        %v732 = vmul.f32 %v722, %v730
        %v733 = vmul.f32 %v723, %v730
        %v734 = vmul.f32 %v724, %v730
        %v735 = vmul.f32 %v725, %v730
        %v737 = vlaneseq
        %v738 = vshrl.u32 %v737, 7
        %v739 = vsub.s32 0, %v738
        %v740 = vrot.slane %v669, %v739
        %v742 = vadd.f32 %v732, %v740
        %v743 = vadd.f32 %v733, %v740
        %v744 = vadd.f32 %v734, %v740
        %v745 = vadd.f32 %v735, %v740
        %v746 = vmul.f32 %v742, 0.5
        %v747 = vmul.f32 %v743, 0.5
        %v748 = vmul.f32 %v744, 0.5
        %v749 = vmul.f32 %v745, 0.5
        %v750 = vmul.f32 %v742, 0.70710677
        %v751 = vmul.f32 %v743, 0.70710677
        %v752 = vmul.f32 %v744, 0.70710677
        %v753 = vmul.f32 %v745, 0.70710677
        %v754 = verf.f32.pop %v750
        %v755 = verf.f32.pop %v751
        %v756 = verf.f32.pop %v752
        %v757 = verf.f32.pop %v753
        %v758 = vadd.f32 %v754, 1.0
        %v759 = vadd.f32 %v755, 1.0
        %v760 = vadd.f32 %v756, 1.0
        %v761 = vadd.f32 %v757, 1.0
        %v762 = vmul.f32 %v746, %v758
        %v763 = vmul.f32 %v747, %v759
        %v764 = vmul.f32 %v748, %v760
        %v765 = vmul.f32 %v749, %v761
        %766 = vst [vmem:[%s349] sm:$0xff] %v762
        %767 = vst [vmem:[%s349 + $0x8] sm:$0xff] %v763
        %768 = vst [vmem:[%s349 + $0x10] sm:$0xff] %v764
        %769 = vst [vmem:[%s349 + $0x18] sm:$0xff] %v765
        %s770 = smul.u32 4, %s21
        %p771 = scmp.lt.s32.totalorder %s770, 7
        %s772 = scalar_select %p771, %s770, 7
        %s773 = smul.addr %s772, 8
        %s774 = scalar_lea.vmem %s9, %s773
        // Predicated region
        $region61: #{_impl.1} parent=55 // pred_check
          %p775 = pneg %p233
        $region62: #{_impl.1} parent=55 // pred_check_branch
          %777 = sbr.rel (%p775) target = $region64
        $region63: #{_impl.1} parent=55 // pred_region
          %s778 = smul.u32 4, %s21
        $region64: #{_impl.1} parent=55 // pred_fallthru
          _
      $region56: #{_impl.1} parent=5 // pred_fallthru
        _
      %p779 = scmp.le.s32.totalorder 2, %s16
      // Predicated region
      $region65: #{_impl.1} parent=5 // pred_check
        %p780 = pneg %p779
      $region66: #{_impl.1} parent=5 // pred_check_branch
        %782 = sbr.rel (%p780) target = $region68
      $region67: #{_impl.1} parent=5 // pred_region
        %s783 = ssub.s32 %s16, 2
        // Predicated region
        $region69: #{_impl.1} parent=67 // pred_check
          %p784 = pneg %p239
        $region70: #{_impl.1} parent=67 // pred_check_branch
          %786 = sbr.rel (%p784) target = $region72
        $region71: #{_impl.1} parent=67 // pred_region
          %s787 = smul.u32 4, %s22
          %p788 = scmp.lt.s32.totalorder %s787, 7
          %s789 = scalar_select %p788, %s787, 7
          %s790 = smul.addr %s789, 8
          %s791 = scalar_lea.vmem %s9, %s790
        $region72: #{_impl.1} parent=67 // pred_fallthru
          _
      $region68: #{_impl.1} parent=5 // pred_fallthru
        _
    $region6: #{_impl.1} parent=1 // loop_footer
      %s20 = sadd.s32 1, %s16
    $region7: #{_impl.1} parent=1 // loop_footer_branch
      %15 = sbr.rel target = $region3
    $region8: #{_impl.1} parent=1 // loop_exit
      _
    %792 = vsyncpa [#allocation3], 1
    %s793 = scalar_lea.sflag [#allocation3], 1
    %794 = vsyncpa %s793, 1

</llo_original>
